<compile_context>
chip_gen: v6e
topology: v6e:2x2x1
jax: 0.10.0
libtpu: 0.0.40
codegen_flags: <defaults>
</compile_context>

<pallas_src>
import math

import jax
import jax.numpy as jnp
from jax.experimental import pallas as pl
from jax.experimental.pallas import tpu as pltpu


# ----------------------------------------------------------------------------------
# Fused whole-network kernel.
#
# Operand order after the activation x (flat list `r` inside the kernel):
#   gc1      : att, W, affine                     -> BN + tanh
#   stage i  : att, W, affine, att, W, affine     -> two BN+tanh GCs, + block residual
#   gc7      : att, W, bias_row                   -> bias only, + input residual
# ----------------------------------------------------------------------------------
def make_gcn_kernel(num_stage):
    def _gconv(a, att_ref, w_ref):
        # graph contraction + fused channel/sequence mix, both on the MXU
        s = jnp.dot(att_ref[...], a, preferred_element_type=jnp.float32)
        return jnp.dot(s, w_ref[...], preferred_element_type=jnp.float32)

    def kernel(*refs):
        x_ref, o_ref = refs[0], refs[-1]
        r = refs[1:-1]

        a0 = x_ref[0]                          # (N, C_in*L) input slab for this batch elem

        def gc_bn_tanh(a, i):
            z = _gconv(a, r[i], r[i + 1])
            aff = r[i + 2]                     # (2, N, C_out*L): [scale, shift'] (bias folded)
            return jnp.tanh(z * aff[0] + aff[1])

        y = gc_bn_tanh(a0, 0)                  # gc1 -> bn1 -> tanh -> (dropout = identity)
        i = 3
        for _ in range(num_stage):             # GC_Block: gc1/bn/tanh, gc2/bn/tanh, +residual
            y1 = gc_bn_tanh(y, i)
            y = gc_bn_tanh(y1, i + 3) + y
            i += 6
        z = _gconv(y, r[i], r[i + 1]) + r[i + 2][...]   # gc7 + bias (1, C_in*L) broadcast
        o_ref[0] = (z + a0).astype(o_ref.dtype)         # + input residual

    return kernel


# ----------------------------------------------------------------------------------
# Host-side (trace-time) re-layout of one GraphConvolution (+ optional eval-mode BN).
# ----------------------------------------------------------------------------------
def _prepare_layer(gc, bn=None, eps=1e-5):
    """Returns (att, W, extra):
         att   : (N, N)
         W     : (C_in*L, C_out*L) = kron(w_c, w_seq)    (channel & sequence mix fused)
         extra : (2, N, C_out*L) stacked [scale, shift'] with the GC bias folded in (BN layer)
                 or (1, C_out*L) tiled bias row (no-BN layer).
    """
    att, w_seq, w_c, bias = gc["att"], gc["w_seq"], gc["w_c"], gc["bias"]
    n = att.shape[0]
    c_in, c_out = w_c.shape
    l = w_seq.shape[0]

    W = jnp.kron(w_c, w_seq)                   # W[c*L+l, o*L+l'] = w_c[c,o] * w_seq[l,l']
    bias_flat = jnp.tile(bias, c_out)          # index o*L+l' -> bias[l']

    if bn is None:
        return att, W, bias_flat[None, :]      # (1, C_out*L)

    inv = jax.lax.rsqrt(bn["rv"] + eps)
    scale = bn["gamma"] * inv                  # per PyTorch-flattened (c, n, l) feature
    shift = bn["beta"] - bn["rm"] * scale
    # PyTorch flattens features as (c, n, l); kernel layout is (n, c*L + l).
    scale = scale.reshape(c_out, n, l).transpose(1, 0, 2).reshape(n, c_out * l)
    shift = shift.reshape(c_out, n, l).transpose(1, 0, 2).reshape(n, c_out * l)
    shift = shift + bias_flat[None, :] * scale  # fold GC bias into the BN affine
    return att, W, jnp.stack([scale, shift])    # (2, N, C_out*L)


def _resident_spec(arr):
    # Full-array block, constant block index -> loaded into VMEM once, never re-fetched.
    zero = (0,) * arr.ndim
    return pl.BlockSpec(arr.shape, lambda b, _z=zero: _z)


# ----------------------------------------------------------------------------------
# GCN forward (single fused Pallas kernel)
# ----------------------------------------------------------------------------------
def gcn_forward_pallas(x, params):
    """x: (B, C_in, N, L) float32 -> (B, C_in, N, L)."""
    B, C_in, N, L = x.shape
    num_stage = len(params["gcbs"])

    # Single layout change at the model boundary: (B, C, N, L) -> lane-dense (B, N, C*L).
    x_f = jnp.transpose(x, (0, 2, 1, 3)).reshape(B, N, C_in * L)

    ops = []
    ops += list(_prepare_layer(params["gc1"], params["bn1"]))
    for blk in params["gcbs"]:
        ops += list(_prepare_layer(blk["gc1"], blk["bn1"]))
        ops += list(_prepare_layer(blk["gc2"], blk["bn2"]))
    ops += list(_prepare_layer(params["gc7"], None))

    out = pl.pallas_call(
        make_gcn_kernel(num_stage),
        out_shape=jax.ShapeDtypeStruct((B, N, C_in * L), x.dtype),
        grid=(B,),
        in_specs=[pl.BlockSpec((1, N, C_in * L), lambda b: (b, 0, 0))]
                 + [_resident_spec(op) for op in ops],
        out_specs=pl.BlockSpec((1, N, C_in * L), lambda b: (b, 0, 0)),
        compiler_params=pltpu.CompilerParams(
            dimension_semantics=("parallel",),          # batch across TCs on v7x
            vmem_limit_bytes=32 * 1024 * 1024),         # guard rail; footprint is ~3 MB
    )(x_f, *ops)

    return jnp.transpose(out.reshape(B, N, C_in, L), (0, 2, 1, 3))


# ----------------------------------------------------------------------------------
# Parameter init (mirrors the PyTorch module's reset_parameters / BatchNorm1d)
# ----------------------------------------------------------------------------------
def init_gc_params(key, in_c, out_c, node_n, seq_len):
    stdv = 1.0 / math.sqrt(node_n)
    k1, k2, k3, k4 = jax.random.split(key, 4)
    return dict(
        att=jax.random.uniform(k1, (node_n, node_n), jnp.float32, minval=-stdv, maxval=stdv),
        w_seq=jax.random.uniform(k2, (seq_len, seq_len), jnp.float32, minval=-stdv, maxval=stdv),
        w_c=jax.random.uniform(k3, (in_c, out_c), jnp.float32, minval=-stdv, maxval=stdv),
        bias=jax.random.uniform(k4, (seq_len,), jnp.float32, minval=-stdv, maxval=stdv),
    )


def init_bn_params(key, num_features):
    # PyTorch BatchNorm1d defaults are gamma=1, beta=0, rm=0, rv=1; randomized here so the
    # eval-mode affine path (and its (c,n,l) -> (n, c*L+l) re-layout) is actually exercised.
    k1, k2, k3, k4 = jax.random.split(key, 4)
    return dict(
        gamma=jax.random.uniform(k1, (num_features,), jnp.float32, minval=0.5, maxval=1.5),
        beta=0.1 * jax.random.normal(k2, (num_features,), jnp.float32),
        rm=0.1 * jax.random.normal(k3, (num_features,), jnp.float32),
        rv=jax.random.uniform(k4, (num_features,), jnp.float32, minval=0.5, maxval=1.5),
    )


def init_gcn_params(key, in_c, out_c, node_n, seq_len, num_stage):
    keys = jax.random.split(key, 3 + 4 * num_stage)
    nf = out_c * node_n * seq_len
    params = {
        "gc1": init_gc_params(keys[0], in_c, out_c, node_n, seq_len),
        "bn1": init_bn_params(keys[1], nf),
        "gc7": init_gc_params(keys[2], out_c, in_c, node_n, seq_len),
        "gcbs": [],
    }
    for i in range(num_stage):
        k = keys[3 + 4 * i: 7 + 4 * i]
        params["gcbs"].append(dict(
            gc1=init_gc_params(k[0], out_c, out_c, node_n, seq_len),
            bn1=init_bn_params(k[1], nf),
            gc2=init_gc_params(k[2], out_c, out_c, node_n, seq_len),
            bn2=init_bn_params(k[3], nf),
        ))
    return params


# ----------------------------------------------------------------------------------
# Pure-JAX reference (same eval-mode semantics), near-exact f32 einsums
# ----------------------------------------------------------------------------------
_HI = jax.lax.Precision.HIGHEST


def gc_ref(x, p):
    support = jnp.einsum("nm,bcml->blnc", p["att"], x, precision=_HI)
    og = jnp.einsum("blnc,co->blno", support, p["w_c"], precision=_HI)
    of = jnp.einsum("blno,lk->bonk", og, p["w_seq"], precision=_HI)
    return of + p["bias"]


def bn_tanh_ref(y, bn, eps=1e-5):
    b = y.shape[0]
    flat = y.reshape(b, -1)
    inv = 1.0 / jnp.sqrt(bn["rv"] + eps)
    flat = (flat - bn["rm"]) * inv * bn["gamma"] + bn["beta"]
    return jnp.tanh(flat.reshape(y.shape))


def gcn_ref(x, params):
    y = bn_tanh_ref(gc_ref(x, params["gc1"]), params["bn1"])
    for blk in params["gcbs"]:
        y1 = bn_tanh_ref(gc_ref(y, blk["gc1"]), blk["bn1"])
        y = bn_tanh_ref(gc_ref(y1, blk["gc2"]), blk["bn2"]) + y
    return gc_ref(y, params["gc7"]) + x


# ----------------------------------------------------------------------------------
if __name__ == "__main__":
    B, C_IN, C_HID = 2, 4, 16
    NODE_N, SEQ_LEN = 22, 20          # module defaults
    NUM_STAGE = 1

    key = jax.random.PRNGKey(0)
    kx, kp = jax.random.split(key)
    x = jax.random.normal(kx, (B, C_IN, NODE_N, SEQ_LEN), jnp.float32)
    params = init_gcn_params(kp, C_IN, C_HID, NODE_N, SEQ_LEN, NUM_STAGE)

    fwd = jax.jit(gcn_forward_pallas)
    out = jax.block_until_ready(fwd(x, params))

    ref = gcn_ref(x, params)
    err = float(jnp.max(jnp.abs(out - ref)))
    assert out.shape == (B, C_IN, NODE_N, SEQ_LEN), out.shape
    assert err < 5e-3, f"max abs err {err}"

    print("KERNEL_OK")
</pallas_src>

<mosaic_0001>
module attributes {stable_mosaic.version = 11 : i64} {
  func.func @kernel(%arg0: i32, %arg1: memref<1x22x80xf32, #tpu.memory_space<vmem>>, %arg2: memref<22x22xf32, #tpu.memory_space<vmem>>, %arg3: memref<80x320xf32, #tpu.memory_space<vmem>>, %arg4: memref<2x22x320xf32, #tpu.memory_space<vmem>>, %arg5: memref<22x22xf32, #tpu.memory_space<vmem>>, %arg6: memref<320x320xf32, #tpu.memory_space<vmem>>, %arg7: memref<2x22x320xf32, #tpu.memory_space<vmem>>, %arg8: memref<22x22xf32, #tpu.memory_space<vmem>>, %arg9: memref<320x320xf32, #tpu.memory_space<vmem>>, %arg10: memref<2x22x320xf32, #tpu.memory_space<vmem>>, %arg11: memref<22x22xf32, #tpu.memory_space<vmem>>, %arg12: memref<320x80xf32, #tpu.memory_space<vmem>>, %arg13: memref<1x80xf32, #tpu.memory_space<vmem>>, %arg14: memref<1x22x80xf32, #tpu.memory_space<vmem>>) attributes {dimension_semantics = [#tpu.dimension_semantics<parallel>], iteration_bounds = array<i64: 2>, scalar_prefetch = 0 : i64, scratch_operands = 0 : i64, tpu.core_type = #tpu.core_type<tc>, window_params = [{transform_indices = @transform_0, window_bounds = array<i64: 1, 22, 80>}, {pipeline_mode = #tpu.pipeline_mode<synchronous>, transform_indices = @transform_1, window_bounds = array<i64: 22, 22>}, {pipeline_mode = #tpu.pipeline_mode<synchronous>, transform_indices = @transform_2, window_bounds = array<i64: 80, 320>}, {pipeline_mode = #tpu.pipeline_mode<synchronous>, transform_indices = @transform_3, window_bounds = array<i64: 2, 22, 320>}, {pipeline_mode = #tpu.pipeline_mode<synchronous>, transform_indices = @transform_4, window_bounds = array<i64: 22, 22>}, {pipeline_mode = #tpu.pipeline_mode<synchronous>, transform_indices = @transform_5, window_bounds = array<i64: 320, 320>}, {pipeline_mode = #tpu.pipeline_mode<synchronous>, transform_indices = @transform_6, window_bounds = array<i64: 2, 22, 320>}, {pipeline_mode = #tpu.pipeline_mode<synchronous>, transform_indices = @transform_7, window_bounds = array<i64: 22, 22>}, {pipeline_mode = #tpu.pipeline_mode<synchronous>, transform_indices = @transform_8, window_bounds = array<i64: 320, 320>}, {pipeline_mode = #tpu.pipeline_mode<synchronous>, transform_indices = @transform_9, window_bounds = array<i64: 2, 22, 320>}, {pipeline_mode = #tpu.pipeline_mode<synchronous>, transform_indices = @transform_10, window_bounds = array<i64: 22, 22>}, {pipeline_mode = #tpu.pipeline_mode<synchronous>, transform_indices = @transform_11, window_bounds = array<i64: 320, 80>}, {pipeline_mode = #tpu.pipeline_mode<synchronous>, transform_indices = @transform_12, window_bounds = array<i64: 1, 80>}, {transform_indices = @transform_13, window_bounds = array<i64: 1, 22, 80>}]} {
    %c0 = arith.constant 0 : index
    %c0_0 = arith.constant 0 : index
    %c0_1 = arith.constant 0 : index
    %0 = vector.load %arg1[%c0, %c0_0, %c0_1] : memref<1x22x80xf32, #tpu.memory_space<vmem>>, vector<1x22x80xf32>
    %1 = vector.shape_cast %0 : vector<1x22x80xf32> to vector<22x80xf32>
    %c0_2 = arith.constant 0 : index
    %c0_3 = arith.constant 0 : index
    %2 = vector.load %arg2[%c0_2, %c0_3] : memref<22x22xf32, #tpu.memory_space<vmem>>, vector<22x22xf32>
    %cst = arith.constant dense<0.000000e+00> : vector<22x80xf32>
    %3 = tpu.matmul %2, %1, %cst {dimension_numbers = #tpu.dot_dimension_numbers<[1], [0], [0], [1], [0, 0, 1, 1], [], []>} : vector<22x22xf32>, vector<22x80xf32>, vector<22x80xf32> -> vector<22x80xf32>
    %c0_4 = arith.constant 0 : index
    %c0_5 = arith.constant 0 : index
    %4 = vector.load %arg3[%c0_4, %c0_5] : memref<80x320xf32, #tpu.memory_space<vmem>>, vector<80x320xf32>
    %cst_6 = arith.constant dense<0.000000e+00> : vector<22x320xf32>
    %5 = tpu.matmul %3, %4, %cst_6 {dimension_numbers = #tpu.dot_dimension_numbers<[1], [0], [0], [1], [0, 0, 1, 1], [], []>} : vector<22x80xf32>, vector<80x320xf32>, vector<22x320xf32> -> vector<22x320xf32>
    %c0_7 = arith.constant 0 : index
    %c0_8 = arith.constant 0 : index
    %c0_9 = arith.constant 0 : index
    %6 = vector.load %arg4[%c0_7, %c0_8, %c0_9] : memref<2x22x320xf32, #tpu.memory_space<vmem>>, vector<1x22x320xf32>
    %7 = vector.shape_cast %6 : vector<1x22x320xf32> to vector<22x320xf32>
    %8 = arith.mulf %5, %7 : vector<22x320xf32>
    %c1 = arith.constant 1 : index
    %c0_10 = arith.constant 0 : index
    %c0_11 = arith.constant 0 : index
    %9 = vector.load %arg4[%c1, %c0_10, %c0_11] : memref<2x22x320xf32, #tpu.memory_space<vmem>>, vector<1x22x320xf32>
    %10 = vector.shape_cast %9 : vector<1x22x320xf32> to vector<22x320xf32>
    %11 = arith.addf %8, %10 : vector<22x320xf32>
    %12 = math.tanh %11 : vector<22x320xf32>
    %c0_12 = arith.constant 0 : index
    %c0_13 = arith.constant 0 : index
    %13 = vector.load %arg5[%c0_12, %c0_13] : memref<22x22xf32, #tpu.memory_space<vmem>>, vector<22x22xf32>
    %cst_14 = arith.constant dense<0.000000e+00> : vector<22x320xf32>
    %14 = tpu.matmul %13, %12, %cst_14 {dimension_numbers = #tpu.dot_dimension_numbers<[1], [0], [0], [1], [0, 0, 1, 1], [], []>} : vector<22x22xf32>, vector<22x320xf32>, vector<22x320xf32> -> vector<22x320xf32>
    %c0_15 = arith.constant 0 : index
    %c0_16 = arith.constant 0 : index
    %15 = vector.load %arg6[%c0_15, %c0_16] : memref<320x320xf32, #tpu.memory_space<vmem>>, vector<320x320xf32>
    %cst_17 = arith.constant dense<0.000000e+00> : vector<22x320xf32>
    %16 = tpu.matmul %14, %15, %cst_17 {dimension_numbers = #tpu.dot_dimension_numbers<[1], [0], [0], [1], [0, 0, 1, 1], [], []>} : vector<22x320xf32>, vector<320x320xf32>, vector<22x320xf32> -> vector<22x320xf32>
    %c0_18 = arith.constant 0 : index
    %c0_19 = arith.constant 0 : index
    %c0_20 = arith.constant 0 : index
    %17 = vector.load %arg7[%c0_18, %c0_19, %c0_20] : memref<2x22x320xf32, #tpu.memory_space<vmem>>, vector<1x22x320xf32>
    %18 = vector.shape_cast %17 : vector<1x22x320xf32> to vector<22x320xf32>
    %19 = arith.mulf %16, %18 : vector<22x320xf32>
    %c1_21 = arith.constant 1 : index
    %c0_22 = arith.constant 0 : index
    %c0_23 = arith.constant 0 : index
    %20 = vector.load %arg7[%c1_21, %c0_22, %c0_23] : memref<2x22x320xf32, #tpu.memory_space<vmem>>, vector<1x22x320xf32>
    %21 = vector.shape_cast %20 : vector<1x22x320xf32> to vector<22x320xf32>
    %22 = arith.addf %19, %21 : vector<22x320xf32>
    %23 = math.tanh %22 : vector<22x320xf32>
    %c0_24 = arith.constant 0 : index
    %c0_25 = arith.constant 0 : index
    %24 = vector.load %arg8[%c0_24, %c0_25] : memref<22x22xf32, #tpu.memory_space<vmem>>, vector<22x22xf32>
    %cst_26 = arith.constant dense<0.000000e+00> : vector<22x320xf32>
    %25 = tpu.matmul %24, %23, %cst_26 {dimension_numbers = #tpu.dot_dimension_numbers<[1], [0], [0], [1], [0, 0, 1, 1], [], []>} : vector<22x22xf32>, vector<22x320xf32>, vector<22x320xf32> -> vector<22x320xf32>
    %c0_27 = arith.constant 0 : index
    %c0_28 = arith.constant 0 : index
    %26 = vector.load %arg9[%c0_27, %c0_28] : memref<320x320xf32, #tpu.memory_space<vmem>>, vector<320x320xf32>
    %cst_29 = arith.constant dense<0.000000e+00> : vector<22x320xf32>
    %27 = tpu.matmul %25, %26, %cst_29 {dimension_numbers = #tpu.dot_dimension_numbers<[1], [0], [0], [1], [0, 0, 1, 1], [], []>} : vector<22x320xf32>, vector<320x320xf32>, vector<22x320xf32> -> vector<22x320xf32>
    %c0_30 = arith.constant 0 : index
    %c0_31 = arith.constant 0 : index
    %c0_32 = arith.constant 0 : index
    %28 = vector.load %arg10[%c0_30, %c0_31, %c0_32] : memref<2x22x320xf32, #tpu.memory_space<vmem>>, vector<1x22x320xf32>
    %29 = vector.shape_cast %28 : vector<1x22x320xf32> to vector<22x320xf32>
    %30 = arith.mulf %27, %29 : vector<22x320xf32>
    %c1_33 = arith.constant 1 : index
    %c0_34 = arith.constant 0 : index
    %c0_35 = arith.constant 0 : index
    %31 = vector.load %arg10[%c1_33, %c0_34, %c0_35] : memref<2x22x320xf32, #tpu.memory_space<vmem>>, vector<1x22x320xf32>
    %32 = vector.shape_cast %31 : vector<1x22x320xf32> to vector<22x320xf32>
    %33 = arith.addf %30, %32 : vector<22x320xf32>
    %34 = math.tanh %33 : vector<22x320xf32>
    %35 = arith.addf %34, %12 : vector<22x320xf32>
    %c0_36 = arith.constant 0 : index
    %c0_37 = arith.constant 0 : index
    %36 = vector.load %arg11[%c0_36, %c0_37] : memref<22x22xf32, #tpu.memory_space<vmem>>, vector<22x22xf32>
    %cst_38 = arith.constant dense<0.000000e+00> : vector<22x320xf32>
    %37 = tpu.matmul %36, %35, %cst_38 {dimension_numbers = #tpu.dot_dimension_numbers<[1], [0], [0], [1], [0, 0, 1, 1], [], []>} : vector<22x22xf32>, vector<22x320xf32>, vector<22x320xf32> -> vector<22x320xf32>
    %c0_39 = arith.constant 0 : index
    %c0_40 = arith.constant 0 : index
    %38 = vector.load %arg12[%c0_39, %c0_40] : memref<320x80xf32, #tpu.memory_space<vmem>>, vector<320x80xf32>
    %cst_41 = arith.constant dense<0.000000e+00> : vector<22x80xf32>
    %39 = tpu.matmul %37, %38, %cst_41 {dimension_numbers = #tpu.dot_dimension_numbers<[1], [0], [0], [1], [0, 0, 1, 1], [], []>} : vector<22x320xf32>, vector<320x80xf32>, vector<22x80xf32> -> vector<22x80xf32>
    %c0_42 = arith.constant 0 : index
    %c0_43 = arith.constant 0 : index
    %40 = vector.load %arg13[%c0_42, %c0_43] : memref<1x80xf32, #tpu.memory_space<vmem>>, vector<1x80xf32>
    %41 = vector.broadcast %40 : vector<1x80xf32> to vector<22x80xf32>
    %42 = arith.addf %39, %41 : vector<22x80xf32>
    %43 = arith.addf %42, %1 : vector<22x80xf32>
    %c0_44 = arith.constant 0 : index
    %c0_45 = arith.constant 0 : index
    %c0_46 = arith.constant 0 : index
    %44 = vector.load %arg14[%c0_44, %c0_45, %c0_46] : memref<1x22x80xf32, #tpu.memory_space<vmem>>, vector<1x22x80xf32>
    %45 = vector.shape_cast %44 : vector<1x22x80xf32> to vector<22x80xf32>
    %46 = vector.shape_cast %43 : vector<22x80xf32> to vector<1x22x80xf32>
    tpu.vector_store %arg14[%c0_44, %c0_45, %c0_46], %46 {strides = array<i32>} : memref<1x22x80xf32, #tpu.memory_space<vmem>>, vector<1x22x80xf32>,
    return
  }
  func.func @transform_0(%arg0: i32) -> (i32, i32, i32) {
    %c0_i32 = arith.constant 0 : i32
    %c0_i32_0 = arith.constant 0 : i32
    %c0_i32_1 = arith.constant 0 : i32
    return %arg0, %c0_i32, %c0_i32_0 : i32, i32, i32
  }
  func.func @transform_1(%arg0: i32) -> (i32, i32) {
    %c0_i32 = arith.constant 0 : i32
    %c0_i32_0 = arith.constant 0 : i32
    %c0_i32_1 = arith.constant 0 : i32
    return %c0_i32, %c0_i32_0 : i32, i32
  }
  func.func @transform_2(%arg0: i32) -> (i32, i32) {
    %c0_i32 = arith.constant 0 : i32
    %c0_i32_0 = arith.constant 0 : i32
    %c0_i32_1 = arith.constant 0 : i32
    return %c0_i32, %c0_i32_0 : i32, i32
  }
  func.func @transform_3(%arg0: i32) -> (i32, i32, i32) {
    %c0_i32 = arith.constant 0 : i32
    %c0_i32_0 = arith.constant 0 : i32
    %c0_i32_1 = arith.constant 0 : i32
    %c0_i32_2 = arith.constant 0 : i32
    return %c0_i32, %c0_i32_0, %c0_i32_1 : i32, i32, i32
  }
  func.func @transform_4(%arg0: i32) -> (i32, i32) {
    %c0_i32 = arith.constant 0 : i32
    %c0_i32_0 = arith.constant 0 : i32
    %c0_i32_1 = arith.constant 0 : i32
    return %c0_i32, %c0_i32_0 : i32, i32
  }
  func.func @transform_5(%arg0: i32) -> (i32, i32) {
    %c0_i32 = arith.constant 0 : i32
    %c0_i32_0 = arith.constant 0 : i32
    %c0_i32_1 = arith.constant 0 : i32
    return %c0_i32, %c0_i32_0 : i32, i32
  }
  func.func @transform_6(%arg0: i32) -> (i32, i32, i32) {
    %c0_i32 = arith.constant 0 : i32
    %c0_i32_0 = arith.constant 0 : i32
    %c0_i32_1 = arith.constant 0 : i32
    %c0_i32_2 = arith.constant 0 : i32
    return %c0_i32, %c0_i32_0, %c0_i32_1 : i32, i32, i32
  }
  func.func @transform_7(%arg0: i32) -> (i32, i32) {
    %c0_i32 = arith.constant 0 : i32
    %c0_i32_0 = arith.constant 0 : i32
    %c0_i32_1 = arith.constant 0 : i32
    return %c0_i32, %c0_i32_0 : i32, i32
  }
  func.func @transform_8(%arg0: i32) -> (i32, i32) {
    %c0_i32 = arith.constant 0 : i32
    %c0_i32_0 = arith.constant 0 : i32
    %c0_i32_1 = arith.constant 0 : i32
    return %c0_i32, %c0_i32_0 : i32, i32
  }
  func.func @transform_9(%arg0: i32) -> (i32, i32, i32) {
    %c0_i32 = arith.constant 0 : i32
    %c0_i32_0 = arith.constant 0 : i32
    %c0_i32_1 = arith.constant 0 : i32
    %c0_i32_2 = arith.constant 0 : i32
    return %c0_i32, %c0_i32_0, %c0_i32_1 : i32, i32, i32
  }
  func.func @transform_10(%arg0: i32) -> (i32, i32) {
    %c0_i32 = arith.constant 0 : i32
    %c0_i32_0 = arith.constant 0 : i32
    %c0_i32_1 = arith.constant 0 : i32
    return %c0_i32, %c0_i32_0 : i32, i32
  }
  func.func @transform_11(%arg0: i32) -> (i32, i32) {
    %c0_i32 = arith.constant 0 : i32
    %c0_i32_0 = arith.constant 0 : i32
    %c0_i32_1 = arith.constant 0 : i32
    return %c0_i32, %c0_i32_0 : i32, i32
  }
  func.func @transform_12(%arg0: i32) -> (i32, i32) {
    %c0_i32 = arith.constant 0 : i32
    %c0_i32_0 = arith.constant 0 : i32
    %c0_i32_1 = arith.constant 0 : i32
    return %c0_i32, %c0_i32_0 : i32, i32
  }
  func.func @transform_13(%arg0: i32) -> (i32, i32, i32) {
    %c0_i32 = arith.constant 0 : i32
    %c0_i32_0 = arith.constant 0 : i32
    %c0_i32_1 = arith.constant 0 : i32
    return %arg0, %c0_i32, %c0_i32_0 : i32, i32, i32
  }
}

</mosaic_0001>

<llo_original>
// kernel: tile.28
$region0: #{tile.28}
  #allocation2 [shape = 's32[1]{0}', space=sflag, size = 0x4, scoped, tag = 'scoped memory for tile.28']
  %s0 = inlined_call_operand.hbm [shape: f32[20], index: 0, kind: input, shape index: {}]
  %s1 = inlined_call_operand.vmem [shape: f32[16,20], index: 1, kind: output, shape index: {}]
  $region1: #{tile.28} parent=0
    #allocation0 [shape = 'u8[512]{0}', space=vmem, size = 0x400, scoped, tag = 'operand span for operand 0']
    #allocation1 [shape = 's32[1]{0}', space=sflag, size = 0x4, scoped, tag = 'scoped memory for tile.28']
    %2 = vsyncpa [#allocation1], 0
    // Predicated region
    $region2: #{tile.28} parent=1 // pred_check
      _
    $region3: #{tile.28} parent=1 // pred_check_branch
      %4 = sbr.rel (0) target = $region5
    $region4: #{tile.28} parent=1 // pred_region
      %s6 = ssub.s32 16, 16
      %7 = vsyncadd [#allocation1], %s6
      %s9 = sshll.u32 [#allocation0], 4
      %s10 = int_to_ptr.vmem [resolvable:$true] %s9
      %12 = dma.hbm_to_vmem [thread:$0]  %s0, 16, %s10, [#allocation1]
    $region5: #{tile.28} parent=1 // pred_fallthru
      _
    // Predicated region
    $region6: #{tile.28} parent=1 // pred_check
      _
    $region7: #{tile.28} parent=1 // pred_check_branch
      %14 = sbr.rel (0) target = $region9
    $region8: #{tile.28} parent=1 // pred_region
      %15 = dma.done [#allocation1], 16
    $region9: #{tile.28} parent=1 // pred_fallthru
      _
    %v16 = vld [vmem:[#allocation0] ss:$0 sm:$0xff]
    %17 = vst [vmem:[%s1] sm:$0xff] %v16
    %s18 = scalar_lea.vmem %s1, 8
    %19 = vst [vmem:[%s18] sm:$0xff] %v16
    %20 = vsyncpa [#allocation1], 1

// kernel: tile.23
$region0: #{tile.23}
  #allocation0 [shape = 's32[1]{0}', space=sflag, size = 0x4, scoped, tag = 'scoped memory for tile.23']
  %s0 = inlined_call_operand.vmem [shape: f32[20], index: 0, kind: input, shape index: {}]
  %s1 = inlined_call_operand.vmem [shape: f32[16,20], index: 1, kind: output, shape index: {}]
  // Predicated region
  $region2: #{tile.23} parent=0 // pred_check
    _
  $region3: #{tile.23} parent=0 // pred_check_branch
    %3 = sbr.rel (0) target = $region5
  $region4: #{tile.23} parent=0 // pred_region
    _
  $region5: #{tile.23} parent=0 // pred_fallthru
    _
  %v4 = vld [vmem:[%s0] ss:$0 sm:$0xff]
  %5 = vst [vmem:[%s1] sm:$0xff] %v4
  %s6 = scalar_lea.vmem %s1, 8
  %7 = vst [vmem:[%s6] sm:$0xff] %v4

// kernel: tile.38
$region0: #{tile.38}
  #allocation0 [shape = 's32[1]{0}', space=sflag, size = 0x4, scoped, tag = 'scoped memory for tile.38']
  %s0 = inlined_call_operand.vmem [shape: f32[20], index: 0, kind: input, shape index: {}]
  %s1 = inlined_call_operand.vmem [shape: f32[4,20], index: 1, kind: output, shape index: {}]
  // Predicated region
  $region2: #{tile.38} parent=0 // pred_check
    _
  $region3: #{tile.38} parent=0 // pred_check_branch
    %3 = sbr.rel (0) target = $region5
  $region4: #{tile.38} parent=0 // pred_region
    _
  $region5: #{tile.38} parent=0 // pred_fallthru
    _
  %v4 = vld [vmem:[%s0] ss:$0 sm:$0xff]
  %5 = vst [vmem:[%s1] sm:$0xf] %v4

// kernel: tile.39
$region0: #{tile.39}
  %s0 = inlined_call_operand.vmem [shape: f32[4,20], index: 0, kind: input, shape index: {}]
  %s1 = inlined_call_operand.vmem [shape: f32[1,80], index: 1, kind: output, shape index: {}]
  $region1: #{tile.39} parent=0
    #allocation0 [shape = 'u8[4096]{0}', space=vmem, size = 0x1000, scoped, tag = 'scoped mem for output reshape']
    #allocation1 [shape = 'u8[4096]{0}', space=vmem, size = 0x1000, scoped, tag = 'scoped mem for input reshape']
    %s3 = sshll.u32 1, 4
    %s4 = ssub.s32 %s3, 1
    %v5 = vld [vmem:[%s0] sm:%s4]
    %6 = vst [vmem:[#allocation1] sm:%s4] %v5
    %v7 = vld [vmem:[#allocation1] sm:$0x1]
    %vm8 = vcmask 162816
    %9 = vst.msk [vmem:[#allocation0] sm:$0x1] %vm8, %v7
    %s10 = scalar_lea.vmem [#allocation1], 3
    %v11 = vld [vmem:[%s10] sm:$0x1]
    %12 = vrot.lane.b32.xlu0 %v11, 60
    %v13 = vpop.permute.xlu0 %12
    %vm14 = vcmask 654816
    %15 = vst.msk [vmem:[#allocation0] sm:$0x1] %vm14, %v13
    %s16 = scalar_lea.vmem [#allocation1], 2
    %v17 = vld [vmem:[%s16] sm:$0x1]
    %18 = vrot.lane.b32.xlu0 %v17, 40
    %v19 = vpop.permute.xlu0 %18
    %vm20 = vcmask 490816
    %21 = vst.msk [vmem:[#allocation0] sm:$0x1] %vm20, %v19
    %s22 = scalar_lea.vmem [#allocation1], 1
    %v23 = vld [vmem:[%s22] sm:$0x1]
    %24 = vrot.lane.b32.xlu0 %v23, 20
    %v25 = vpop.permute.xlu0 %24
    %vm26 = vcmask 326816
    %27 = vst.msk [vmem:[#allocation0] sm:$0x1] %vm26, %v25
    %s29 = sshll.u32 1, 1
    %s30 = ssub.s32 %s29, 1
    %v32 = vld [vmem:[#allocation0] sm:%s30]
    %s33 = sshll.u32 1, 1
    %s34 = ssub.s32 %s33, 1
    %35 = vst [vmem:[%s1] sm:%s34] %v32

// kernel: gcn_forward_pallas.1
$region0: #{gcn_forward_pallas.1}
  #allocation0 [shape = 'u32[]', space=smem, size = 0x4, offset = 0x4, fixed_abs, tag = 'smem constant byte address 0x4 - core index']
  #allocation1 [shape = 'u32[144,128]{1,0:T(1,128)}', space=vmem, size = 0x12000, scoped, tag = 'internal scratch']
  %s0 = inlined_call_operand.vmem [shape: f32[2,22,80], index: 0, kind: input, shape index: {}]
  %s1 = inlined_call_operand.vmem [shape: f32[22,22], index: 1, kind: input, shape index: {}]
  %s2 = inlined_call_operand.vmem [shape: f32[80,320], index: 2, kind: input, shape index: {}]
  %s3 = inlined_call_operand.vmem [shape: f32[2,22,320], index: 3, kind: input, shape index: {}]
  %s4 = inlined_call_operand.vmem [shape: f32[22,22], index: 4, kind: input, shape index: {}]
  %s5 = inlined_call_operand.vmem [shape: f32[320,320], index: 5, kind: input, shape index: {}]
  %s6 = inlined_call_operand.vmem [shape: f32[2,22,320], index: 6, kind: input, shape index: {}]
  %s7 = inlined_call_operand.vmem [shape: f32[22,22], index: 7, kind: input, shape index: {}]
  %s8 = inlined_call_operand.vmem [shape: f32[320,320], index: 8, kind: input, shape index: {}]
  %s9 = inlined_call_operand.vmem [shape: f32[2,22,320], index: 9, kind: input, shape index: {}]
  %s10 = inlined_call_operand.vmem [shape: f32[22,22], index: 10, kind: input, shape index: {}]
  %s11 = inlined_call_operand.vmem [shape: f32[320,80], index: 11, kind: input, shape index: {}]
  %s12 = inlined_call_operand.vmem [shape: f32[1,80], index: 12, kind: input, shape index: {}]
  %s13 = inlined_call_operand.vmem [shape: f32[2,22,80], index: 13, kind: output, shape index: {}]
  %s14 = sld [smem:[#allocation0]]
  $region85: #{gcn_forward_pallas.1} parent=0
    _
  %s16 = ssub.s32 1, %s14
  %s17 = scalar_select 0, %s16, %s14
  loop: start=0, step=1, limit=4
  $region2: #{gcn_forward_pallas.1} parent=0 // loop_pre_header
    _
  $region3: #{gcn_forward_pallas.1} parent=0 // loop_header
    %s19 = sphi 0, %s23
    %p20 = scmp.ge.s32.totalorder %s19, 4
    %s29 = sphi 0, %s31
    %s32 = sphi 0, %s29
    %s33 = sphi 0, %s32
    %s49 = sphi 0, %s33
    %s53 = sphi 0, %s53
    %s55 = sphi 0, %s53
    %s56 = sphi 0, %s55
    %s70 = sphi 0, %s56
    %s74 = sphi 0, %s74
    %s76 = sphi 0, %s74
    %s77 = sphi 0, %s76
    %s91 = sphi 0, %s77
    %s95 = sphi 0, %s95
    %s97 = sphi 0, %s95
    %s98 = sphi 0, %s97
    %s112 = sphi 0, %s98
    %s116 = sphi 0, %s116
    %s118 = sphi 0, %s116
    %s119 = sphi 0, %s118
    %s133 = sphi 0, %s119
    %s137 = sphi 0, %s137
    %s139 = sphi 0, %s137
    %s140 = sphi 0, %s139
    %s154 = sphi 0, %s140
    %s158 = sphi 0, %s158
    %s160 = sphi 0, %s158
    %s161 = sphi 0, %s160
    %s175 = sphi 0, %s161
    %s179 = sphi 0, %s179
    %s181 = sphi 0, %s179
    %s182 = sphi 0, %s181
    %s196 = sphi 0, %s182
    %s200 = sphi 0, %s200
    %s202 = sphi 0, %s200
    %s203 = sphi 0, %s202
    %s217 = sphi 0, %s203
    %s221 = sphi 0, %s221
    %s223 = sphi 0, %s221
    %s224 = sphi 0, %s223
    %s238 = sphi 0, %s224
    %s242 = sphi 0, %s242
    %s244 = sphi 0, %s242
    %s245 = sphi 0, %s244
    %s259 = sphi 0, %s245
    %s263 = sphi 0, %s263
    %s265 = sphi 0, %s263
    %s266 = sphi 0, %s265
    %s280 = sphi 0, %s266
    %s284 = sphi 0, %s284
    %s286 = sphi 0, %s284
    %s287 = sphi 0, %s286
    %s301 = sphi 0, %s287
    %s307 = sphi 0, %s309
    %s310 = sphi 0, %s307
    %s311 = sphi 0, %s310
    %s327 = sphi 0, %s311
  $region4: #{gcn_forward_pallas.1} parent=0 // loop_header_branch
    %22 = sbr.rel (%p20) target = $region8
  $region5: #{gcn_forward_pallas.1} parent=0 // loop_body
    %s24 = ssub.s32 %s19, 1
    %s25 = ssub.s32 %s19, 2
    %s26 = sadd.s32 %s19, 1
    %s27 = ssub.s32 %s19, %s26
    %p28 = scmp.eq.s32.totalorder %s27, 0
    %s30 = sadd.s32 %s29, 1
    %s31 = scalar_select %p28, %s29, %s30
    %p34 = pneg %p28
    %p35 = scmp.eq.s32.totalorder %s19, 1
    %p36 = por %p34, %p35
    %p37 = scmp.ne.s32.totalorder %s29, %s32
    %p38 = scmp.eq.s32.totalorder %s19, 0
    %p39 = por %p37, %p38
    %p40 = scmp.ne.s32.totalorder %s29, %s32
    %p41 = scmp.eq.s32.totalorder %s24, 1
    %p42 = por %p40, %p41
    %p43 = scmp.ne.s32.totalorder %s32, %s33
    %p44 = scmp.eq.s32.totalorder %s24, 0
    %p45 = por %p43, %p44
    %p46 = scmp.ne.s32.totalorder %s32, %s33
    %p47 = scmp.eq.s32.totalorder %s25, 1
    %p48 = por %p46, %p47
    %p50 = scmp.ne.s32.totalorder %s33, %s49
    %p51 = scmp.eq.s32.totalorder %s25, 0
    %p52 = por %p50, %p51
    %s54 = sadd.s32 %s53, 1
    %p57 = scmp.eq.s32.totalorder %s19, 1
    %p58 = scmp.ne.s32.totalorder %s53, %s55
    %p59 = scmp.eq.s32.totalorder %s19, 0
    %p60 = por %p58, %p59
    %p61 = scmp.ne.s32.totalorder %s53, %s55
    %p62 = scmp.eq.s32.totalorder %s24, 1
    %p63 = por %p61, %p62
    %p64 = scmp.ne.s32.totalorder %s55, %s56
    %p65 = scmp.eq.s32.totalorder %s24, 0
    %p66 = por %p64, %p65
    %p67 = scmp.ne.s32.totalorder %s55, %s56
    %p68 = scmp.eq.s32.totalorder %s25, 1
    %p69 = por %p67, %p68
    %p71 = scmp.ne.s32.totalorder %s56, %s70
    %p72 = scmp.eq.s32.totalorder %s25, 0
    %p73 = por %p71, %p72
    %s75 = sadd.s32 %s74, 1
    %p78 = scmp.eq.s32.totalorder %s19, 1
    %p79 = scmp.ne.s32.totalorder %s74, %s76
    %p80 = scmp.eq.s32.totalorder %s19, 0
    %p81 = por %p79, %p80
    %p82 = scmp.ne.s32.totalorder %s74, %s76
    %p83 = scmp.eq.s32.totalorder %s24, 1
    %p84 = por %p82, %p83
    %p85 = scmp.ne.s32.totalorder %s76, %s77
    %p86 = scmp.eq.s32.totalorder %s24, 0
    %p87 = por %p85, %p86
    %p88 = scmp.ne.s32.totalorder %s76, %s77
    %p89 = scmp.eq.s32.totalorder %s25, 1
    %p90 = por %p88, %p89
    %p92 = scmp.ne.s32.totalorder %s77, %s91
    %p93 = scmp.eq.s32.totalorder %s25, 0
    %p94 = por %p92, %p93
    %s96 = sadd.s32 %s95, 1
    %p99 = scmp.eq.s32.totalorder %s19, 1
    %p100 = scmp.ne.s32.totalorder %s95, %s97
    %p101 = scmp.eq.s32.totalorder %s19, 0
    %p102 = por %p100, %p101
    %p103 = scmp.ne.s32.totalorder %s95, %s97
    %p104 = scmp.eq.s32.totalorder %s24, 1
    %p105 = por %p103, %p104
    %p106 = scmp.ne.s32.totalorder %s97, %s98
    %p107 = scmp.eq.s32.totalorder %s24, 0
    %p108 = por %p106, %p107
    %p109 = scmp.ne.s32.totalorder %s97, %s98
    %p110 = scmp.eq.s32.totalorder %s25, 1
    %p111 = por %p109, %p110
    %p113 = scmp.ne.s32.totalorder %s98, %s112
    %p114 = scmp.eq.s32.totalorder %s25, 0
    %p115 = por %p113, %p114
    %s117 = sadd.s32 %s116, 1
    %p120 = scmp.eq.s32.totalorder %s19, 1
    %p121 = scmp.ne.s32.totalorder %s116, %s118
    %p122 = scmp.eq.s32.totalorder %s19, 0
    %p123 = por %p121, %p122
    %p124 = scmp.ne.s32.totalorder %s116, %s118
    %p125 = scmp.eq.s32.totalorder %s24, 1
    %p126 = por %p124, %p125
    %p127 = scmp.ne.s32.totalorder %s118, %s119
    %p128 = scmp.eq.s32.totalorder %s24, 0
    %p129 = por %p127, %p128
    %p130 = scmp.ne.s32.totalorder %s118, %s119
    %p131 = scmp.eq.s32.totalorder %s25, 1
    %p132 = por %p130, %p131
    %p134 = scmp.ne.s32.totalorder %s119, %s133
    %p135 = scmp.eq.s32.totalorder %s25, 0
    %p136 = por %p134, %p135
    %s138 = sadd.s32 %s137, 1
    %p141 = scmp.eq.s32.totalorder %s19, 1
    %p142 = scmp.ne.s32.totalorder %s137, %s139
    %p143 = scmp.eq.s32.totalorder %s19, 0
    %p144 = por %p142, %p143
    %p145 = scmp.ne.s32.totalorder %s137, %s139
    %p146 = scmp.eq.s32.totalorder %s24, 1
    %p147 = por %p145, %p146
    %p148 = scmp.ne.s32.totalorder %s139, %s140
    %p149 = scmp.eq.s32.totalorder %s24, 0
    %p150 = por %p148, %p149
    %p151 = scmp.ne.s32.totalorder %s139, %s140
    %p152 = scmp.eq.s32.totalorder %s25, 1
    %p153 = por %p151, %p152
    %p155 = scmp.ne.s32.totalorder %s140, %s154
    %p156 = scmp.eq.s32.totalorder %s25, 0
    %p157 = por %p155, %p156
    %s159 = sadd.s32 %s158, 1
    %p162 = scmp.eq.s32.totalorder %s19, 1
    %p163 = scmp.ne.s32.totalorder %s158, %s160
    %p164 = scmp.eq.s32.totalorder %s19, 0
    %p165 = por %p163, %p164
    %p166 = scmp.ne.s32.totalorder %s158, %s160
    %p167 = scmp.eq.s32.totalorder %s24, 1
    %p168 = por %p166, %p167
    %p169 = scmp.ne.s32.totalorder %s160, %s161
    %p170 = scmp.eq.s32.totalorder %s24, 0
    %p171 = por %p169, %p170
    %p172 = scmp.ne.s32.totalorder %s160, %s161
    %p173 = scmp.eq.s32.totalorder %s25, 1
    %p174 = por %p172, %p173
    %p176 = scmp.ne.s32.totalorder %s161, %s175
    %p177 = scmp.eq.s32.totalorder %s25, 0
    %p178 = por %p176, %p177
    %s180 = sadd.s32 %s179, 1
    %p183 = scmp.eq.s32.totalorder %s19, 1
    %p184 = scmp.ne.s32.totalorder %s179, %s181
    %p185 = scmp.eq.s32.totalorder %s19, 0
    %p186 = por %p184, %p185
    %p187 = scmp.ne.s32.totalorder %s179, %s181
    %p188 = scmp.eq.s32.totalorder %s24, 1
    %p189 = por %p187, %p188
    %p190 = scmp.ne.s32.totalorder %s181, %s182
    %p191 = scmp.eq.s32.totalorder %s24, 0
    %p192 = por %p190, %p191
    %p193 = scmp.ne.s32.totalorder %s181, %s182
    %p194 = scmp.eq.s32.totalorder %s25, 1
    %p195 = por %p193, %p194
    %p197 = scmp.ne.s32.totalorder %s182, %s196
    %p198 = scmp.eq.s32.totalorder %s25, 0
    %p199 = por %p197, %p198
    %s201 = sadd.s32 %s200, 1
    %p204 = scmp.eq.s32.totalorder %s19, 1
    %p205 = scmp.ne.s32.totalorder %s200, %s202
    %p206 = scmp.eq.s32.totalorder %s19, 0
    %p207 = por %p205, %p206
    %p208 = scmp.ne.s32.totalorder %s200, %s202
    %p209 = scmp.eq.s32.totalorder %s24, 1
    %p210 = por %p208, %p209
    %p211 = scmp.ne.s32.totalorder %s202, %s203
    %p212 = scmp.eq.s32.totalorder %s24, 0
    %p213 = por %p211, %p212
    %p214 = scmp.ne.s32.totalorder %s202, %s203
    %p215 = scmp.eq.s32.totalorder %s25, 1
    %p216 = por %p214, %p215
    %p218 = scmp.ne.s32.totalorder %s203, %s217
    %p219 = scmp.eq.s32.totalorder %s25, 0
    %p220 = por %p218, %p219
    %s222 = sadd.s32 %s221, 1
    %p225 = scmp.eq.s32.totalorder %s19, 1
    %p226 = scmp.ne.s32.totalorder %s221, %s223
    %p227 = scmp.eq.s32.totalorder %s19, 0
    %p228 = por %p226, %p227
    %p229 = scmp.ne.s32.totalorder %s221, %s223
    %p230 = scmp.eq.s32.totalorder %s24, 1
    %p231 = por %p229, %p230
    %p232 = scmp.ne.s32.totalorder %s223, %s224
    %p233 = scmp.eq.s32.totalorder %s24, 0
    %p234 = por %p232, %p233
    %p235 = scmp.ne.s32.totalorder %s223, %s224
    %p236 = scmp.eq.s32.totalorder %s25, 1
    %p237 = por %p235, %p236
    %p239 = scmp.ne.s32.totalorder %s224, %s238
    %p240 = scmp.eq.s32.totalorder %s25, 0
    %p241 = por %p239, %p240
    %s243 = sadd.s32 %s242, 1
    %p246 = scmp.eq.s32.totalorder %s19, 1
    %p247 = scmp.ne.s32.totalorder %s242, %s244
    %p248 = scmp.eq.s32.totalorder %s19, 0
    %p249 = por %p247, %p248
    %p250 = scmp.ne.s32.totalorder %s242, %s244
    %p251 = scmp.eq.s32.totalorder %s24, 1
    %p252 = por %p250, %p251
    %p253 = scmp.ne.s32.totalorder %s244, %s245
    %p254 = scmp.eq.s32.totalorder %s24, 0
    %p255 = por %p253, %p254
    %p256 = scmp.ne.s32.totalorder %s244, %s245
    %p257 = scmp.eq.s32.totalorder %s25, 1
    %p258 = por %p256, %p257
    %p260 = scmp.ne.s32.totalorder %s245, %s259
    %p261 = scmp.eq.s32.totalorder %s25, 0
    %p262 = por %p260, %p261
    %s264 = sadd.s32 %s263, 1
    %p267 = scmp.eq.s32.totalorder %s19, 1
    %p268 = scmp.ne.s32.totalorder %s263, %s265
    %p269 = scmp.eq.s32.totalorder %s19, 0
    %p270 = por %p268, %p269
    %p271 = scmp.ne.s32.totalorder %s263, %s265
    %p272 = scmp.eq.s32.totalorder %s24, 1
    %p273 = por %p271, %p272
    %p274 = scmp.ne.s32.totalorder %s265, %s266
    %p275 = scmp.eq.s32.totalorder %s24, 0
    %p276 = por %p274, %p275
    %p277 = scmp.ne.s32.totalorder %s265, %s266
    %p278 = scmp.eq.s32.totalorder %s25, 1
    %p279 = por %p277, %p278
    %p281 = scmp.ne.s32.totalorder %s266, %s280
    %p282 = scmp.eq.s32.totalorder %s25, 0
    %p283 = por %p281, %p282
    %s285 = sadd.s32 %s284, 1
    %p288 = scmp.eq.s32.totalorder %s19, 1
    %p289 = scmp.ne.s32.totalorder %s284, %s286
    %p290 = scmp.eq.s32.totalorder %s19, 0
    %p291 = por %p289, %p290
    %p292 = scmp.ne.s32.totalorder %s284, %s286
    %p293 = scmp.eq.s32.totalorder %s24, 1
    %p294 = por %p292, %p293
    %p295 = scmp.ne.s32.totalorder %s286, %s287
    %p296 = scmp.eq.s32.totalorder %s24, 0
    %p297 = por %p295, %p296
    %p298 = scmp.ne.s32.totalorder %s286, %s287
    %p299 = scmp.eq.s32.totalorder %s25, 1
    %p300 = por %p298, %p299
    %p302 = scmp.ne.s32.totalorder %s287, %s301
    %p303 = scmp.eq.s32.totalorder %s25, 0
    %p304 = por %p302, %p303
    %s305 = ssub.s32 %s19, %s26
    %p306 = scmp.eq.s32.totalorder %s305, 0
    %s308 = sadd.s32 %s307, 1
    %s309 = scalar_select %p306, %s307, %s308
    %p312 = pneg %p306
    %p313 = scmp.eq.s32.totalorder %s19, 1
    %p314 = por %p312, %p313
    %p315 = scmp.ne.s32.totalorder %s307, %s310
    %p316 = scmp.eq.s32.totalorder %s19, 0
    %p317 = por %p315, %p316
    %p318 = scmp.ne.s32.totalorder %s307, %s310
    %p319 = scmp.eq.s32.totalorder %s24, 1
    %p320 = por %p318, %p319
    %p321 = scmp.ne.s32.totalorder %s310, %s311
    %p322 = scmp.eq.s32.totalorder %s24, 0
    %p323 = por %p321, %p322
    %p324 = scmp.ne.s32.totalorder %s310, %s311
    %p325 = scmp.eq.s32.totalorder %s25, 1
    %p326 = por %p324, %p325
    %p328 = scmp.ne.s32.totalorder %s311, %s327
    %p329 = scmp.eq.s32.totalorder %s25, 0
    %p330 = por %p328, %p329
    %p331 = scmp.le.s32.totalorder 1, %s19
    %p332 = scmp.lt.s32.totalorder %s19, 3
    %p333 = pnand %p331, %p332
    %p334 = pneg %p333
    // Predicated region
    $region9: #{gcn_forward_pallas.1} parent=5 // pred_check
      _
    $region10: #{gcn_forward_pallas.1} parent=5 // pred_check_branch
      %336 = sbr.rel (%p333) target = $region12
    $region11: #{gcn_forward_pallas.1} parent=5 // pred_region
      %s337 = ssub.s32 %s19, 1
      // Predicated region
      $region13: #{gcn_forward_pallas.1} parent=11 // pred_check
        %p338 = pneg %p66
      $region14: #{gcn_forward_pallas.1} parent=11 // pred_check_branch
        %340 = sbr.rel (%p338) target = $region16
      $region15: #{gcn_forward_pallas.1} parent=11 // pred_region
        _
      $region16: #{gcn_forward_pallas.1} parent=11 // pred_fallthru
        _
      // Predicated region
      $region17: #{gcn_forward_pallas.1} parent=11 // pred_check
        %p341 = pneg %p87
      $region18: #{gcn_forward_pallas.1} parent=11 // pred_check_branch
        %343 = sbr.rel (%p341) target = $region20
      $region19: #{gcn_forward_pallas.1} parent=11 // pred_region
        _
      $region20: #{gcn_forward_pallas.1} parent=11 // pred_fallthru
        _
      // Predicated region
      $region21: #{gcn_forward_pallas.1} parent=11 // pred_check
        %p344 = pneg %p108
      $region22: #{gcn_forward_pallas.1} parent=11 // pred_check_branch
        %346 = sbr.rel (%p344) target = $region24
      $region23: #{gcn_forward_pallas.1} parent=11 // pred_region
        _
      $region24: #{gcn_forward_pallas.1} parent=11 // pred_fallthru
        _
      // Predicated region
      $region25: #{gcn_forward_pallas.1} parent=11 // pred_check
        %p347 = pneg %p129
      $region26: #{gcn_forward_pallas.1} parent=11 // pred_check_branch
        %349 = sbr.rel (%p347) target = $region28
      $region27: #{gcn_forward_pallas.1} parent=11 // pred_region
        _
      $region28: #{gcn_forward_pallas.1} parent=11 // pred_fallthru
        _
      // Predicated region
      $region29: #{gcn_forward_pallas.1} parent=11 // pred_check
        %p350 = pneg %p150
      $region30: #{gcn_forward_pallas.1} parent=11 // pred_check_branch
        %352 = sbr.rel (%p350) target = $region32
      $region31: #{gcn_forward_pallas.1} parent=11 // pred_region
        _
      $region32: #{gcn_forward_pallas.1} parent=11 // pred_fallthru
        _
      // Predicated region
      $region33: #{gcn_forward_pallas.1} parent=11 // pred_check
        %p353 = pneg %p171
      $region34: #{gcn_forward_pallas.1} parent=11 // pred_check_branch
        %355 = sbr.rel (%p353) target = $region36
      $region35: #{gcn_forward_pallas.1} parent=11 // pred_region
        _
      $region36: #{gcn_forward_pallas.1} parent=11 // pred_fallthru
        _
      // Predicated region
      $region37: #{gcn_forward_pallas.1} parent=11 // pred_check
        %p356 = pneg %p192
      $region38: #{gcn_forward_pallas.1} parent=11 // pred_check_branch
        %358 = sbr.rel (%p356) target = $region40
      $region39: #{gcn_forward_pallas.1} parent=11 // pred_region
        _
      $region40: #{gcn_forward_pallas.1} parent=11 // pred_fallthru
        _
      // Predicated region
      $region41: #{gcn_forward_pallas.1} parent=11 // pred_check
        %p359 = pneg %p213
      $region42: #{gcn_forward_pallas.1} parent=11 // pred_check_branch
        %361 = sbr.rel (%p359) target = $region44
      $region43: #{gcn_forward_pallas.1} parent=11 // pred_region
        _
      $region44: #{gcn_forward_pallas.1} parent=11 // pred_fallthru
        _
      // Predicated region
      $region45: #{gcn_forward_pallas.1} parent=11 // pred_check
        %p362 = pneg %p234
      $region46: #{gcn_forward_pallas.1} parent=11 // pred_check_branch
        %364 = sbr.rel (%p362) target = $region48
      $region47: #{gcn_forward_pallas.1} parent=11 // pred_region
        _
      $region48: #{gcn_forward_pallas.1} parent=11 // pred_fallthru
        _
      // Predicated region
      $region49: #{gcn_forward_pallas.1} parent=11 // pred_check
        %p365 = pneg %p255
      $region50: #{gcn_forward_pallas.1} parent=11 // pred_check_branch
        %367 = sbr.rel (%p365) target = $region52
      $region51: #{gcn_forward_pallas.1} parent=11 // pred_region
        _
      $region52: #{gcn_forward_pallas.1} parent=11 // pred_fallthru
        _
      // Predicated region
      $region53: #{gcn_forward_pallas.1} parent=11 // pred_check
        %p368 = pneg %p276
      $region54: #{gcn_forward_pallas.1} parent=11 // pred_check_branch
        %370 = sbr.rel (%p368) target = $region56
      $region55: #{gcn_forward_pallas.1} parent=11 // pred_region
        _
      $region56: #{gcn_forward_pallas.1} parent=11 // pred_fallthru
        _
      // Predicated region
      $region57: #{gcn_forward_pallas.1} parent=11 // pred_check
        %p371 = pneg %p297
      $region58: #{gcn_forward_pallas.1} parent=11 // pred_check_branch
        %373 = sbr.rel (%p371) target = $region60
      $region59: #{gcn_forward_pallas.1} parent=11 // pred_region
        _
      $region60: #{gcn_forward_pallas.1} parent=11 // pred_fallthru
        _
    $region12: #{gcn_forward_pallas.1} parent=5 // pred_fallthru
      _
    %p374 = scmp.lt.s32.totalorder %s19, 2
    // Predicated region
    $region61: #{gcn_forward_pallas.1} parent=5 // pred_check
      %p375 = pneg %p374
    $region62: #{gcn_forward_pallas.1} parent=5 // pred_check_branch
      %377 = sbr.rel (%p375) target = $region64
    $region63: #{gcn_forward_pallas.1} parent=5 // pred_region
      // Predicated region
      $region65: #{gcn_forward_pallas.1} parent=63 // pred_check
        %p378 = pneg %p39
      $region66: #{gcn_forward_pallas.1} parent=63 // pred_check_branch
        %380 = sbr.rel (%p378) target = $region68
      $region67: #{gcn_forward_pallas.1} parent=63 // pred_region
        %p381 = scmp.lt.s32.totalorder %s19, 1
        %s382 = scalar_select %p381, %s19, 1
        %s383 = smul.addr %s382, 3
        %s384 = smul.addr %s383, 8
        %s385 = scalar_lea.vmem %s0, %s384
      $region68: #{gcn_forward_pallas.1} parent=63 // pred_fallthru
        _
    $region64: #{gcn_forward_pallas.1} parent=5 // pred_fallthru
      _
    %p386 = scmp.le.s32.totalorder 1, %s19
    %p387 = scmp.lt.s32.totalorder %s19, 3
    %p388 = pnand %p386, %p387
    %p389 = pneg %p388
    // Predicated region
    $region69: #{gcn_forward_pallas.1} parent=5 // pred_check
      _
    $region70: #{gcn_forward_pallas.1} parent=5 // pred_check_branch
      %391 = sbr.rel (%p388) target = $region72
    $region71: #{gcn_forward_pallas.1} parent=5 // pred_region
      %s392 = ssub.s32 %s19, 1
      %p393 = scmp.lt.s32.totalorder %s24, 1
      %s394 = scalar_select %p393, %s24, 1
      %s395 = smul.addr %s394, 3
      %s396 = smul.addr %s395, 8
      %s397 = scalar_lea.vmem %s0, %s396
      %p398 = pneg %p45
      %p399 = pneg %p42
      %p400 = pneg %p66
      %p401 = pneg %p63
      %p402 = pneg %p87
      %p403 = pneg %p84
      %p404 = pneg %p108
      %p405 = pneg %p105
      %p406 = pneg %p129
      %p407 = pneg %p126
      %p408 = pneg %p150
      %p409 = pneg %p147
      %p410 = pneg %p171
      %p411 = pneg %p168
      %p412 = pneg %p192
      %p413 = pneg %p189
      %p414 = pneg %p213
      %p415 = pneg %p210
      %p416 = pneg %p234
      %p417 = pneg %p231
      %p418 = pneg %p255
      %p419 = pneg %p252
      %p420 = pneg %p276
      %p421 = pneg %p273
      %p422 = pneg %p297
      %p423 = pneg %p294
      %p424 = pneg %p323
      %p425 = pneg %p320
      %p426 = scmp.lt.s32.totalorder %s24, 1
      %s427 = scalar_select %p426, %s24, 1
      %s428 = smul.addr %s427, 3
      %s429 = smul.addr %s428, 8
      %s430 = scalar_lea.vmem %s13, %s429
      %p431 = scmp.lt.s32.totalorder %s24, 1
      %s432 = scalar_select %p431, %s24, 1
      %s433 = smul.addr %s432, 3
      %s434 = smul.addr %s433, 8
      %s435 = scalar_lea.vmem %s0, %s434
      %p436 = scmp.lt.s32.totalorder %s24, 1
      %s437 = scalar_select %p436, %s24, 1
      %s438 = smul.addr %s437, 3
      %s439 = smul.addr %s438, 8
      %s440 = scalar_lea.vmem %s13, %s439
      %v441 = vld [vmem:[%s435] sm:$0xff]
      %v442 = vld [vmem:[%s435 + $0x8] sm:$0xff]
      %v443 = vld [vmem:[%s435 + $0x10] sm:$0x3f]
      %v444 = vld [vmem:[%s1] sm:$0xff]
      %v445 = vld [vmem:[%s1 + $0x8] sm:$0xff]
      %v446 = vld [vmem:[%s1 + $0x10] sm:$0x3f]
      %vm447 = vcmask 179200
      %v449 = vsel %vm447, %v444, 0
      %v452 = vsel %vm447, %v445, 0
      %v455 = vsel %vm447, %v446, 0
      %vm457 = vcmask 1045504
      %v459 = vsel %vm457, %v443, 0
      %461 = vmatprep.subr.mxu0 0.0
      %462 = vmatpush1.msra.mxu0 0.0
      %463 = vmatprep.subr.mxu0 0.0
      %464 = vmatpush1.msra.mxu0 0.0
      %465 = vmatprep.subr.mxu0 0.0
      %466 = vmatpush1.msra.mxu0 0.0
      %467 = vmatprep.subr.mxu0 0.0
      %468 = vmatpush1.msra.mxu0 0.0
      %469 = vmatprep.subr.mxu0 0.0
      %470 = vmatpush1.msra.mxu0 0.0
      %471 = vmatprep.subr.mxu0 0.0
      %472 = vmatpush1.msra.mxu0 0.0
      %473 = vmatprep.subr.mxu0 0.0
      %474 = vmatpush1.msra.mxu0 0.0
      %475 = vmatprep.subr.mxu0 0.0
      %476 = vmatpush1.msra.mxu0 0.0
      %477 = vmatprep.subr.mxu0 0.0
      %478 = vmatpush1.msra.mxu0 0.0
      %479 = vmatprep.subr.mxu0 0.0
      %480 = vmatpush1.msra.mxu0 0.0
      %481 = vmatprep.subr.mxu0 0.0
      %482 = vmatpush1.msra.mxu0 0.0
      %483 = vmatprep.subr.mxu0 0.0
      %484 = vmatpush1.msra.mxu0 0.0
      %485 = vmatprep.subr.mxu0 0.0
      %486 = vmatpush1.msra.mxu0 0.0
      %487 = vmatprep.subr.mxu0 0.0
      %488 = vmatpush1.msra.mxu0 %v459
      %489 = vmatprep.subr.mxu0 0.0
      %490 = vmatpush1.msra.mxu0 %v442
      %491 = vmatprep.subr.mxu0 0.0
      %492 = vmatpush1.msra.mxu0 %v441
      %493 = vmatprep.subr.mxu0 0.0
      %494 = vmatpush2.msra.mxu0 0.0
      %495 = vmatprep.subr.mxu0 0.0
      %496 = vmatpush2.msra.mxu0 0.0
      %497 = vmatprep.subr.mxu0 0.0
      %498 = vmatpush2.msra.mxu0 0.0
      %499 = vmatprep.subr.mxu0 0.0
      %500 = vmatpush2.msra.mxu0 0.0
      %501 = vmatprep.subr.mxu0 0.0
      %502 = vmatpush2.msra.mxu0 0.0
      %503 = vmatprep.subr.mxu0 0.0
      %504 = vmatpush2.msra.mxu0 0.0
      %505 = vmatprep.subr.mxu0 0.0
      %506 = vmatpush2.msra.mxu0 0.0
      %507 = vmatprep.subr.mxu0 0.0
      %508 = vmatpush2.msra.mxu0 0.0
      %509 = vmatprep.subr.mxu0 0.0
      %510 = vmatpush2.msra.mxu0 0.0
      %511 = vmatprep.subr.mxu0 0.0
      %512 = vmatpush2.msra.mxu0 0.0
      %513 = vmatprep.subr.mxu0 0.0
      %514 = vmatpush2.msra.mxu0 0.0
      %515 = vmatprep.subr.mxu0 0.0
      %516 = vmatpush2.msra.mxu0 0.0
      %517 = vmatprep.subr.mxu0 0.0
      %518 = vmatpush2.msra.mxu0 0.0
      %519 = vmatprep.subr.mxu0 0.0
      %520 = vmatpush2.msra.mxu0 0.0
      %521 = vmatprep.subr.mxu0 0.0
      %522 = vmatpush2.msra.mxu0 0.0
      %523 = vmatprep.subr.mxu0 0.0
      %524 = vmatpush2.msra.mxu0 0.0
      %525 = vmatprep.mubr.f32.mxu0 0.0
      %526 = vmatmul.mubr.f32.gmra.mxu0 %v449
      %v527 = vpop.f32.mrf.mxu0
      %v528 = vadd.f32 0.0, %v527
      %v529 = vpop.f32.mrf.mxu0
      %530 = vmatprep.mubr.f32.mxu0 0.0
      %531 = vmatmul.mubr.f32.gmra.mxu0 %v452
      %v532 = vpop.f32.mrf.mxu0
      %v533 = vadd.f32 0.0, %v532
      %v534 = vpop.f32.mrf.mxu0
      %535 = vmatprep.mubr.f32.mxu0 0.0
      %536 = vmatmul.mubr.f32.gmra.mxu0 %v455
      %v537 = vpop.f32.mrf.mxu0
      %v538 = vadd.f32 0.0, %v537
      %v539 = vpop.f32.mrf.mxu0
      %540 = vdwg.mxu0
      %v541 = vld [vmem:[%s2] sm:$0xff]
      %v542 = vld [vmem:[%s2 + $0x8] sm:$0xff]
      %v543 = vld [vmem:[%s2 + $0x10] sm:$0xff]
      %v544 = vld [vmem:[%s2 + $0x18] sm:$0xff]
      %v545 = vld [vmem:[%s2 + $0x20] sm:$0xff]
      %v546 = vld [vmem:[%s2 + $0x28] sm:$0xff]
      %v547 = vld [vmem:[%s2 + $0x30] sm:$0xff]
      %v548 = vld [vmem:[%s2 + $0x38] sm:$0xff]
      %v549 = vld [vmem:[%s2 + $0x40] sm:$0xff]
      %v550 = vld [vmem:[%s2 + $0x48] sm:$0xff]
      %v551 = vld [vmem:[%s2 + $0x50] sm:$0xff]
      %v552 = vld [vmem:[%s2 + $0x58] sm:$0xff]
      %v553 = vld [vmem:[%s2 + $0x60] sm:$0xff]
      %v554 = vld [vmem:[%s2 + $0x68] sm:$0xff]
      %v555 = vld [vmem:[%s2 + $0x70] sm:$0xff]
      %v556 = vld [vmem:[%s2 + $0x78] sm:$0xff]
      %v557 = vld [vmem:[%s2 + $0x80] sm:$0xff]
      %v558 = vld [vmem:[%s2 + $0x88] sm:$0xff]
      %v559 = vld [vmem:[%s2 + $0x90] sm:$0xff]
      %v560 = vld [vmem:[%s2 + $0x98] sm:$0xff]
      %v561 = vld [vmem:[%s2 + $0xa0] sm:$0xff]
      %v562 = vld [vmem:[%s2 + $0xa8] sm:$0xff]
      %v563 = vld [vmem:[%s2 + $0xb0] sm:$0xff]
      %v564 = vld [vmem:[%s2 + $0xb8] sm:$0xff]
      %v565 = vld [vmem:[%s2 + $0xc0] sm:$0xff]
      %v566 = vld [vmem:[%s2 + $0xc8] sm:$0xff]
      %v567 = vld [vmem:[%s2 + $0xd0] sm:$0xff]
      %v568 = vld [vmem:[%s2 + $0xd8] sm:$0xff]
      %v569 = vld [vmem:[%s2 + $0xe0] sm:$0xff]
      %v570 = vld [vmem:[%s2 + $0xe8] sm:$0xff]
      %vm571 = vcmask 654336
      %v573 = vsel %vm571, %v528, 0
      %v576 = vsel %vm571, %v533, 0
      %v579 = vsel %vm571, %v538, 0
      %581 = vmatprep.subr.mxu0 0.0
      %582 = vmatpush1.msra.mxu0 0.0
      %583 = vmatprep.subr.mxu0 0.0
      %584 = vmatpush1.msra.mxu0 0.0
      %585 = vmatprep.subr.mxu0 0.0
      %586 = vmatpush1.msra.mxu0 0.0
      %587 = vmatprep.subr.mxu0 0.0
      %588 = vmatpush1.msra.mxu0 0.0
      %589 = vmatprep.subr.mxu0 0.0
      %590 = vmatpush1.msra.mxu0 0.0
      %591 = vmatprep.subr.mxu0 0.0
      %592 = vmatpush1.msra.mxu0 0.0
      %593 = vmatprep.subr.mxu0 %v569
      %594 = vmatpush1.msra.mxu0 %v568
      %595 = vmatprep.subr.mxu0 %v566
      %596 = vmatpush1.msra.mxu0 %v565
      %597 = vmatprep.subr.mxu0 %v563
      %598 = vmatpush1.msra.mxu0 %v562
      %599 = vmatprep.subr.mxu0 %v560
      %600 = vmatpush1.msra.mxu0 %v559
      %601 = vmatprep.subr.mxu0 %v557
      %602 = vmatpush1.msra.mxu0 %v556
      %603 = vmatprep.subr.mxu0 %v554
      %604 = vmatpush1.msra.mxu0 %v553
      %605 = vmatprep.subr.mxu0 %v551
      %606 = vmatpush1.msra.mxu0 %v550
      %607 = vmatprep.subr.mxu0 %v548
      %608 = vmatpush1.msra.mxu0 %v547
      %609 = vmatprep.subr.mxu0 %v545
      %610 = vmatpush1.msra.mxu0 %v544
      %611 = vmatprep.subr.mxu0 %v542
      %612 = vmatpush1.msra.mxu0 %v541
      %613 = vmatprep.subr.mxu0 0.0
      %614 = vmatpush2.msra.mxu0 0.0
      %615 = vmatprep.subr.mxu0 0.0
      %616 = vmatpush2.msra.mxu0 0.0
      %617 = vmatprep.subr.mxu0 0.0
      %618 = vmatpush2.msra.mxu0 0.0
      %619 = vmatprep.subr.mxu0 0.0
      %620 = vmatpush2.msra.mxu0 0.0
      %621 = vmatprep.subr.mxu0 0.0
      %622 = vmatpush2.msra.mxu0 0.0
      %623 = vmatprep.subr.mxu0 0.0
      %624 = vmatpush2.msra.mxu0 0.0
      %625 = vmatprep.subr.mxu0 0.0
      %626 = vmatpush2.msra.mxu0 0.0
      %627 = vmatprep.subr.mxu0 0.0
      %628 = vmatpush2.msra.mxu0 0.0
      %629 = vmatprep.subr.mxu0 0.0
      %630 = vmatpush2.msra.mxu0 0.0
      %631 = vmatprep.subr.mxu0 0.0
      %632 = vmatpush2.msra.mxu0 0.0
      %633 = vmatprep.subr.mxu0 0.0
      %634 = vmatpush2.msra.mxu0 0.0
      %635 = vmatprep.subr.mxu0 0.0
      %636 = vmatpush2.msra.mxu0 0.0
      %637 = vmatprep.subr.mxu0 0.0
      %638 = vmatpush2.msra.mxu0 0.0
      %639 = vmatprep.subr.mxu0 0.0
      %640 = vmatpush2.msra.mxu0 0.0
      %641 = vmatprep.subr.mxu0 0.0
      %642 = vmatpush2.msra.mxu0 0.0
      %643 = vmatprep.subr.mxu0 0.0
      %644 = vmatpush2.msra.mxu0 0.0
      %645 = vmatprep.mubr.f32.mxu0 0.0
      %646 = vmatmul.mubr.f32.gmra.mxu0 %v573
      %v647 = vpop.f32.mrf.mxu0
      %v648 = vadd.f32 0.0, %v647
      %v649 = vpop.f32.mrf.mxu0
      %v650 = vadd.f32 0.0, %v649
      %651 = vmatprep.mubr.f32.mxu0 0.0
      %652 = vmatmul.mubr.f32.gmra.mxu0 %v576
      %v653 = vpop.f32.mrf.mxu0
      %v654 = vadd.f32 0.0, %v653
      %v655 = vpop.f32.mrf.mxu0
      %v656 = vadd.f32 0.0, %v655
      %657 = vmatprep.mubr.f32.mxu0 0.0
      %658 = vmatmul.mubr.f32.gmra.mxu0 %v579
      %v659 = vpop.f32.mrf.mxu0
      %v660 = vadd.f32 0.0, %v659
      %v661 = vpop.f32.mrf.mxu0
      %v662 = vadd.f32 0.0, %v661
      %663 = vdwg.mxu0
      %664 = vmatprep.subr.mxu0 0.0
      %665 = vmatpush1.msra.mxu0 0.0
      %666 = vmatprep.subr.mxu0 0.0
      %667 = vmatpush1.msra.mxu0 0.0
      %668 = vmatprep.subr.mxu0 0.0
      %669 = vmatpush1.msra.mxu0 0.0
      %670 = vmatprep.subr.mxu0 0.0
      %671 = vmatpush1.msra.mxu0 0.0
      %672 = vmatprep.subr.mxu0 0.0
      %673 = vmatpush1.msra.mxu0 0.0
      %674 = vmatprep.subr.mxu0 0.0
      %675 = vmatpush1.msra.mxu0 0.0
      %676 = vmatprep.subr.mxu0 0.0
      %677 = vmatpush1.msra.mxu0 %v570
      %678 = vmatprep.subr.mxu0 0.0
      %679 = vmatpush1.msra.mxu0 %v567
      %680 = vmatprep.subr.mxu0 0.0
      %681 = vmatpush1.msra.mxu0 %v564
      %682 = vmatprep.subr.mxu0 0.0
      %683 = vmatpush1.msra.mxu0 %v561
      %684 = vmatprep.subr.mxu0 0.0
      %685 = vmatpush1.msra.mxu0 %v558
      %686 = vmatprep.subr.mxu0 0.0
      %687 = vmatpush1.msra.mxu0 %v555
      %688 = vmatprep.subr.mxu0 0.0
      %689 = vmatpush1.msra.mxu0 %v552
      %690 = vmatprep.subr.mxu0 0.0
      %691 = vmatpush1.msra.mxu0 %v549
      %692 = vmatprep.subr.mxu0 0.0
      %693 = vmatpush1.msra.mxu0 %v546
      %694 = vmatprep.subr.mxu0 0.0
      %695 = vmatpush1.msra.mxu0 %v543
      %696 = vmatprep.subr.mxu0 0.0
      %697 = vmatpush2.msra.mxu0 0.0
      %698 = vmatprep.subr.mxu0 0.0
      %699 = vmatpush2.msra.mxu0 0.0
      %700 = vmatprep.subr.mxu0 0.0
      %701 = vmatpush2.msra.mxu0 0.0
      %702 = vmatprep.subr.mxu0 0.0
      %703 = vmatpush2.msra.mxu0 0.0
      %704 = vmatprep.subr.mxu0 0.0
      %705 = vmatpush2.msra.mxu0 0.0
      %706 = vmatprep.subr.mxu0 0.0
      %707 = vmatpush2.msra.mxu0 0.0
      %708 = vmatprep.subr.mxu0 0.0
      %709 = vmatpush2.msra.mxu0 0.0
      %710 = vmatprep.subr.mxu0 0.0
      %711 = vmatpush2.msra.mxu0 0.0
      %712 = vmatprep.subr.mxu0 0.0
      %713 = vmatpush2.msra.mxu0 0.0
      %714 = vmatprep.subr.mxu0 0.0
      %715 = vmatpush2.msra.mxu0 0.0
      %716 = vmatprep.subr.mxu0 0.0
      %717 = vmatpush2.msra.mxu0 0.0
      %718 = vmatprep.subr.mxu0 0.0
      %719 = vmatpush2.msra.mxu0 0.0
      %720 = vmatprep.subr.mxu0 0.0
      %721 = vmatpush2.msra.mxu0 0.0
      %722 = vmatprep.subr.mxu0 0.0
      %723 = vmatpush2.msra.mxu0 0.0
      %724 = vmatprep.subr.mxu0 0.0
      %725 = vmatpush2.msra.mxu0 0.0
      %726 = vmatprep.subr.mxu0 0.0
      %727 = vmatpush2.msra.mxu0 0.0
      %728 = vmatprep.mubr.f32.mxu0 0.0
      %729 = vmatmul.mubr.f32.gmra.mxu0 %v573
      %v730 = vpop.f32.mrf.mxu0
      %v731 = vadd.f32 0.0, %v730
      %v732 = vpop.f32.mrf.mxu0
      %733 = vmatprep.mubr.f32.mxu0 0.0
      %734 = vmatmul.mubr.f32.gmra.mxu0 %v576
      %v735 = vpop.f32.mrf.mxu0
      %v736 = vadd.f32 0.0, %v735
      %v737 = vpop.f32.mrf.mxu0
      %738 = vmatprep.mubr.f32.mxu0 0.0
      %739 = vmatmul.mubr.f32.gmra.mxu0 %v579
      %v740 = vpop.f32.mrf.mxu0
      %v741 = vadd.f32 0.0, %v740
      %v742 = vpop.f32.mrf.mxu0
      %743 = vdwg.mxu0
      %v744 = vld [vmem:[%s3] sm:$0xff]
      %v745 = vld [vmem:[%s3 + $0x8] sm:$0xff]
      %v746 = vld [vmem:[%s3 + $0x10] sm:$0xff]
      %v747 = vld [vmem:[%s3 + $0x18] sm:$0xff]
      %v748 = vld [vmem:[%s3 + $0x20] sm:$0xff]
      %v749 = vld [vmem:[%s3 + $0x28] sm:$0xff]
      %v750 = vld [vmem:[%s3 + $0x30] sm:$0x3f]
      %v751 = vld [vmem:[%s3 + $0x38] sm:$0x3f]
      %v752 = vld [vmem:[%s3 + $0x40] sm:$0x3f]
      %v753 = vmul.f32 %v648, %v744
      %v754 = vmul.f32 %v650, %v745
      %v755 = vmul.f32 %v731, %v746
      %v756 = vmul.f32 %v654, %v747
      %v757 = vmul.f32 %v656, %v748
      %v758 = vmul.f32 %v736, %v749
      %v759 = vmul.f32 %v660, %v750
      %v760 = vmul.f32 %v662, %v751
      %v761 = vmul.f32 %v741, %v752
      %s762 = scalar_lea.vmem %s3, 72
      %v763 = vld [vmem:[%s762] sm:$0xff]
      %v764 = vld [vmem:[%s762 + $0x8] sm:$0xff]
      %v765 = vld [vmem:[%s762 + $0x10] sm:$0xff]
      %v766 = vld [vmem:[%s762 + $0x18] sm:$0xff]
      %v767 = vld [vmem:[%s762 + $0x20] sm:$0xff]
      %v768 = vld [vmem:[%s762 + $0x28] sm:$0xff]
      %v769 = vld [vmem:[%s762 + $0x30] sm:$0x3f]
      %v770 = vld [vmem:[%s762 + $0x38] sm:$0x3f]
      %v771 = vld [vmem:[%s762 + $0x40] sm:$0x3f]
      %v772 = vadd.f32 %v753, %v763
      %v773 = vadd.f32 %v754, %v764
      %v774 = vadd.f32 %v755, %v765
      %v775 = vadd.f32 %v756, %v766
      %v776 = vadd.f32 %v757, %v767
      %v777 = vadd.f32 %v758, %v768
      %v778 = vadd.f32 %v759, %v769
      %v779 = vadd.f32 %v760, %v770
      %v780 = vadd.f32 %v761, %v771
      %v781 = vtanh.pop %v772
      %v782 = vtanh.pop %v773
      %v783 = vtanh.pop %v774
      %v784 = vtanh.pop %v775
      %v785 = vtanh.pop %v776
      %v786 = vtanh.pop %v777
      %v787 = vtanh.pop %v778
      %v788 = vtanh.pop %v779
      %v789 = vtanh.pop %v780
      %v790 = vld [vmem:[%s4] sm:$0xff]
      %v791 = vld [vmem:[%s4 + $0x8] sm:$0xff]
      %v792 = vld [vmem:[%s4 + $0x10] sm:$0x3f]
      %v794 = vsel %vm447, %v790, 0
      %v797 = vsel %vm447, %v791, 0
      %v800 = vsel %vm447, %v792, 0
      %v803 = vsel %vm457, %v787, 0
      %v806 = vsel %vm457, %v788, 0
      %v809 = vsel %vm457, %v789, 0
      %811 = vmatprep.subr.mxu0 0.0
      %812 = vmatpush1.msra.mxu0 0.0
      %813 = vmatprep.subr.mxu0 0.0
      %814 = vmatpush1.msra.mxu0 0.0
      %815 = vmatprep.subr.mxu0 0.0
      %816 = vmatpush1.msra.mxu0 0.0
      %817 = vmatprep.subr.mxu0 0.0
      %818 = vmatpush1.msra.mxu0 0.0
      %819 = vmatprep.subr.mxu0 0.0
      %820 = vmatpush1.msra.mxu0 0.0
      %821 = vmatprep.subr.mxu0 0.0
      %822 = vmatpush1.msra.mxu0 0.0
      %823 = vmatprep.subr.mxu0 0.0
      %824 = vmatpush1.msra.mxu0 0.0
      %825 = vmatprep.subr.mxu0 0.0
      %826 = vmatpush1.msra.mxu0 0.0
      %827 = vmatprep.subr.mxu0 0.0
      %828 = vmatpush1.msra.mxu0 0.0
      %829 = vmatprep.subr.mxu0 0.0
      %830 = vmatpush1.msra.mxu0 0.0
      %831 = vmatprep.subr.mxu0 0.0
      %832 = vmatpush1.msra.mxu0 0.0
      %833 = vmatprep.subr.mxu0 0.0
      %834 = vmatpush1.msra.mxu0 0.0
      %835 = vmatprep.subr.mxu0 0.0
      %836 = vmatpush1.msra.mxu0 0.0
      %837 = vmatprep.subr.mxu0 %v806
      %838 = vmatpush1.msra.mxu0 %v803
      %839 = vmatprep.subr.mxu0 %v785
      %840 = vmatpush1.msra.mxu0 %v784
      %841 = vmatprep.subr.mxu0 %v782
      %842 = vmatpush1.msra.mxu0 %v781
      %843 = vmatprep.subr.mxu0 0.0
      %844 = vmatpush2.msra.mxu0 0.0
      %845 = vmatprep.subr.mxu0 0.0
      %846 = vmatpush2.msra.mxu0 0.0
      %847 = vmatprep.subr.mxu0 0.0
      %848 = vmatpush2.msra.mxu0 0.0
      %849 = vmatprep.subr.mxu0 0.0
      %850 = vmatpush2.msra.mxu0 0.0
      %851 = vmatprep.subr.mxu0 0.0
      %852 = vmatpush2.msra.mxu0 0.0
      %853 = vmatprep.subr.mxu0 0.0
      %854 = vmatpush2.msra.mxu0 0.0
      %855 = vmatprep.subr.mxu0 0.0
      %856 = vmatpush2.msra.mxu0 0.0
      %857 = vmatprep.subr.mxu0 0.0
      %858 = vmatpush2.msra.mxu0 0.0
      %859 = vmatprep.subr.mxu0 0.0
      %860 = vmatpush2.msra.mxu0 0.0
      %861 = vmatprep.subr.mxu0 0.0
      %862 = vmatpush2.msra.mxu0 0.0
      %863 = vmatprep.subr.mxu0 0.0
      %864 = vmatpush2.msra.mxu0 0.0
      %865 = vmatprep.subr.mxu0 0.0
      %866 = vmatpush2.msra.mxu0 0.0
      %867 = vmatprep.subr.mxu0 0.0
      %868 = vmatpush2.msra.mxu0 0.0
      %869 = vmatprep.subr.mxu0 0.0
      %870 = vmatpush2.msra.mxu0 0.0
      %871 = vmatprep.subr.mxu0 0.0
      %872 = vmatpush2.msra.mxu0 0.0
      %873 = vmatprep.subr.mxu0 0.0
      %874 = vmatpush2.msra.mxu0 0.0
      %875 = vmatprep.mubr.f32.mxu0 0.0
      %876 = vmatmul.mubr.f32.gmra.mxu0 %v794
      %v877 = vpop.f32.mrf.mxu0
      %v878 = vadd.f32 0.0, %v877
      %v879 = vpop.f32.mrf.mxu0
      %v880 = vadd.f32 0.0, %v879
      %881 = vmatprep.mubr.f32.mxu0 0.0
      %882 = vmatmul.mubr.f32.gmra.mxu0 %v797
      %v883 = vpop.f32.mrf.mxu0
      %v884 = vadd.f32 0.0, %v883
      %v885 = vpop.f32.mrf.mxu0
      %v886 = vadd.f32 0.0, %v885
      %887 = vmatprep.mubr.f32.mxu0 0.0
      %888 = vmatmul.mubr.f32.gmra.mxu0 %v800
      %v889 = vpop.f32.mrf.mxu0
      %v890 = vadd.f32 0.0, %v889
      %v891 = vpop.f32.mrf.mxu0
      %v892 = vadd.f32 0.0, %v891
      %893 = vdwg.mxu0
      %894 = vmatprep.subr.mxu0 0.0
      %895 = vmatpush1.msra.mxu0 0.0
      %896 = vmatprep.subr.mxu0 0.0
      %897 = vmatpush1.msra.mxu0 0.0
      %898 = vmatprep.subr.mxu0 0.0
      %899 = vmatpush1.msra.mxu0 0.0
      %900 = vmatprep.subr.mxu0 0.0
      %901 = vmatpush1.msra.mxu0 0.0
      %902 = vmatprep.subr.mxu0 0.0
      %903 = vmatpush1.msra.mxu0 0.0
      %904 = vmatprep.subr.mxu0 0.0
      %905 = vmatpush1.msra.mxu0 0.0
      %906 = vmatprep.subr.mxu0 0.0
      %907 = vmatpush1.msra.mxu0 0.0
      %908 = vmatprep.subr.mxu0 0.0
      %909 = vmatpush1.msra.mxu0 0.0
      %910 = vmatprep.subr.mxu0 0.0
      %911 = vmatpush1.msra.mxu0 0.0
      %912 = vmatprep.subr.mxu0 0.0
      %913 = vmatpush1.msra.mxu0 0.0
      %914 = vmatprep.subr.mxu0 0.0
      %915 = vmatpush1.msra.mxu0 0.0
      %916 = vmatprep.subr.mxu0 0.0
      %917 = vmatpush1.msra.mxu0 0.0
      %918 = vmatprep.subr.mxu0 0.0
      %919 = vmatpush1.msra.mxu0 0.0
      %920 = vmatprep.subr.mxu0 0.0
      %921 = vmatpush1.msra.mxu0 %v809
      %922 = vmatprep.subr.mxu0 0.0
      %923 = vmatpush1.msra.mxu0 %v786
      %924 = vmatprep.subr.mxu0 0.0
      %925 = vmatpush1.msra.mxu0 %v783
      %926 = vmatprep.subr.mxu0 0.0
      %927 = vmatpush2.msra.mxu0 0.0
      %928 = vmatprep.subr.mxu0 0.0
      %929 = vmatpush2.msra.mxu0 0.0
      %930 = vmatprep.subr.mxu0 0.0
      %931 = vmatpush2.msra.mxu0 0.0
      %932 = vmatprep.subr.mxu0 0.0
      %933 = vmatpush2.msra.mxu0 0.0
      %934 = vmatprep.subr.mxu0 0.0
      %935 = vmatpush2.msra.mxu0 0.0
      %936 = vmatprep.subr.mxu0 0.0
      %937 = vmatpush2.msra.mxu0 0.0
      %938 = vmatprep.subr.mxu0 0.0
      %939 = vmatpush2.msra.mxu0 0.0
      %940 = vmatprep.subr.mxu0 0.0
      %941 = vmatpush2.msra.mxu0 0.0
      %942 = vmatprep.subr.mxu0 0.0
      %943 = vmatpush2.msra.mxu0 0.0
      %944 = vmatprep.subr.mxu0 0.0
      %945 = vmatpush2.msra.mxu0 0.0
      %946 = vmatprep.subr.mxu0 0.0
      %947 = vmatpush2.msra.mxu0 0.0
      %948 = vmatprep.subr.mxu0 0.0
      %949 = vmatpush2.msra.mxu0 0.0
      %950 = vmatprep.subr.mxu0 0.0
      %951 = vmatpush2.msra.mxu0 0.0
      %952 = vmatprep.subr.mxu0 0.0
      %953 = vmatpush2.msra.mxu0 0.0
      %954 = vmatprep.subr.mxu0 0.0
      %955 = vmatpush2.msra.mxu0 0.0
      %956 = vmatprep.subr.mxu0 0.0
      %957 = vmatpush2.msra.mxu0 0.0
      %958 = vmatprep.mubr.f32.mxu0 0.0
      %959 = vmatmul.mubr.f32.gmra.mxu0 %v794
      %v960 = vpop.f32.mrf.mxu0
      %v961 = vadd.f32 0.0, %v960
      %v962 = vpop.f32.mrf.mxu0
      %963 = vmatprep.mubr.f32.mxu0 0.0
      %964 = vmatmul.mubr.f32.gmra.mxu0 %v797
      %v965 = vpop.f32.mrf.mxu0
      %v966 = vadd.f32 0.0, %v965
      %v967 = vpop.f32.mrf.mxu0
      %968 = vmatprep.mubr.f32.mxu0 0.0
      %969 = vmatmul.mubr.f32.gmra.mxu0 %v800
      %v970 = vpop.f32.mrf.mxu0
      %v971 = vadd.f32 0.0, %v970
      %v972 = vpop.f32.mrf.mxu0
      %973 = vdwg.mxu0
      %v974 = vld [vmem:[%s5] sm:$0xff]
      %v975 = vld [vmem:[%s5 + $0x8] sm:$0xff]
      %v976 = vld [vmem:[%s5 + $0x10] sm:$0xff]
      %v977 = vld [vmem:[%s5 + $0x18] sm:$0xff]
      %v978 = vld [vmem:[%s5 + $0x20] sm:$0xff]
      %v979 = vld [vmem:[%s5 + $0x28] sm:$0xff]
      %v980 = vld [vmem:[%s5 + $0x30] sm:$0xff]
      %v981 = vld [vmem:[%s5 + $0x38] sm:$0xff]
      %v982 = vld [vmem:[%s5 + $0x40] sm:$0xff]
      %v983 = vld [vmem:[%s5 + $0x48] sm:$0xff]
      %v984 = vld [vmem:[%s5 + $0x50] sm:$0xff]
      %v985 = vld [vmem:[%s5 + $0x58] sm:$0xff]
      %v986 = vld [vmem:[%s5 + $0x60] sm:$0xff]
      %v987 = vld [vmem:[%s5 + $0x68] sm:$0xff]
      %v988 = vld [vmem:[%s5 + $0x70] sm:$0xff]
      %v989 = vld [vmem:[%s5 + $0x78] sm:$0xff]
      %v990 = vld [vmem:[%s5 + $0x80] sm:$0xff]
      %v991 = vld [vmem:[%s5 + $0x88] sm:$0xff]
      %v992 = vld [vmem:[%s5 + $0x90] sm:$0xff]
      %v993 = vld [vmem:[%s5 + $0x98] sm:$0xff]
      %v994 = vld [vmem:[%s5 + $0xa0] sm:$0xff]
      %v995 = vld [vmem:[%s5 + $0xa8] sm:$0xff]
      %v996 = vld [vmem:[%s5 + $0xb0] sm:$0xff]
      %v997 = vld [vmem:[%s5 + $0xb8] sm:$0xff]
      %v998 = vld [vmem:[%s5 + $0xc0] sm:$0xff]
      %v999 = vld [vmem:[%s5 + $0xc8] sm:$0xff]
      %v1000 = vld [vmem:[%s5 + $0xd0] sm:$0xff]
      %v1001 = vld [vmem:[%s5 + $0xd8] sm:$0xff]
      %v1002 = vld [vmem:[%s5 + $0xe0] sm:$0xff]
      %v1003 = vld [vmem:[%s5 + $0xe8] sm:$0xff]
      %v1004 = vld [vmem:[%s5 + $0xf0] sm:$0xff]
      %v1005 = vld [vmem:[%s5 + $0xf8] sm:$0xff]
      %v1006 = vld [vmem:[%s5 + $0x100] sm:$0xff]
      %v1007 = vld [vmem:[%s5 + $0x108] sm:$0xff]
      %v1008 = vld [vmem:[%s5 + $0x110] sm:$0xff]
      %v1009 = vld [vmem:[%s5 + $0x118] sm:$0xff]
      %v1010 = vld [vmem:[%s5 + $0x120] sm:$0xff]
      %v1011 = vld [vmem:[%s5 + $0x128] sm:$0xff]
      %v1012 = vld [vmem:[%s5 + $0x130] sm:$0xff]
      %v1013 = vld [vmem:[%s5 + $0x138] sm:$0xff]
      %v1014 = vld [vmem:[%s5 + $0x140] sm:$0xff]
      %v1015 = vld [vmem:[%s5 + $0x148] sm:$0xff]
      %v1016 = vld [vmem:[%s5 + $0x150] sm:$0xff]
      %v1017 = vld [vmem:[%s5 + $0x158] sm:$0xff]
      %v1018 = vld [vmem:[%s5 + $0x160] sm:$0xff]
      %v1019 = vld [vmem:[%s5 + $0x168] sm:$0xff]
      %v1020 = vld [vmem:[%s5 + $0x170] sm:$0xff]
      %v1021 = vld [vmem:[%s5 + $0x178] sm:$0xff]
      %v1022 = vld [vmem:[%s5 + $0x180] sm:$0xff]
      %v1023 = vld [vmem:[%s5 + $0x188] sm:$0xff]
      %v1024 = vld [vmem:[%s5 + $0x190] sm:$0xff]
      %v1025 = vld [vmem:[%s5 + $0x198] sm:$0xff]
      %v1026 = vld [vmem:[%s5 + $0x1a0] sm:$0xff]
      %v1027 = vld [vmem:[%s5 + $0x1a8] sm:$0xff]
      %v1028 = vld [vmem:[%s5 + $0x1b0] sm:$0xff]
      %v1029 = vld [vmem:[%s5 + $0x1b8] sm:$0xff]
      %v1030 = vld [vmem:[%s5 + $0x1c0] sm:$0xff]
      %v1031 = vld [vmem:[%s5 + $0x1c8] sm:$0xff]
      %v1032 = vld [vmem:[%s5 + $0x1d0] sm:$0xff]
      %v1033 = vld [vmem:[%s5 + $0x1d8] sm:$0xff]
      %v1034 = vld [vmem:[%s5 + $0x1e0] sm:$0xff]
      %v1035 = vld [vmem:[%s5 + $0x1e8] sm:$0xff]
      %v1036 = vld [vmem:[%s5 + $0x1f0] sm:$0xff]
      %v1037 = vld [vmem:[%s5 + $0x1f8] sm:$0xff]
      %v1038 = vld [vmem:[%s5 + $0x200] sm:$0xff]
      %v1039 = vld [vmem:[%s5 + $0x208] sm:$0xff]
      %v1040 = vld [vmem:[%s5 + $0x210] sm:$0xff]
      %v1041 = vld [vmem:[%s5 + $0x218] sm:$0xff]
      %v1042 = vld [vmem:[%s5 + $0x220] sm:$0xff]
      %v1043 = vld [vmem:[%s5 + $0x228] sm:$0xff]
      %v1044 = vld [vmem:[%s5 + $0x230] sm:$0xff]
      %v1045 = vld [vmem:[%s5 + $0x238] sm:$0xff]
      %v1046 = vld [vmem:[%s5 + $0x240] sm:$0xff]
      %v1047 = vld [vmem:[%s5 + $0x248] sm:$0xff]
      %v1048 = vld [vmem:[%s5 + $0x250] sm:$0xff]
      %v1049 = vld [vmem:[%s5 + $0x258] sm:$0xff]
      %v1050 = vld [vmem:[%s5 + $0x260] sm:$0xff]
      %v1051 = vld [vmem:[%s5 + $0x268] sm:$0xff]
      %v1052 = vld [vmem:[%s5 + $0x270] sm:$0xff]
      %v1053 = vld [vmem:[%s5 + $0x278] sm:$0xff]
      %v1054 = vld [vmem:[%s5 + $0x280] sm:$0xff]
      %v1055 = vld [vmem:[%s5 + $0x288] sm:$0xff]
      %v1056 = vld [vmem:[%s5 + $0x290] sm:$0xff]
      %v1057 = vld [vmem:[%s5 + $0x298] sm:$0xff]
      %v1058 = vld [vmem:[%s5 + $0x2a0] sm:$0xff]
      %v1059 = vld [vmem:[%s5 + $0x2a8] sm:$0xff]
      %v1060 = vld [vmem:[%s5 + $0x2b0] sm:$0xff]
      %v1061 = vld [vmem:[%s5 + $0x2b8] sm:$0xff]
      %v1062 = vld [vmem:[%s5 + $0x2c0] sm:$0xff]
      %v1063 = vld [vmem:[%s5 + $0x2c8] sm:$0xff]
      %v1064 = vld [vmem:[%s5 + $0x2d0] sm:$0xff]
      %v1065 = vld [vmem:[%s5 + $0x2d8] sm:$0xff]
      %v1066 = vld [vmem:[%s5 + $0x2e0] sm:$0xff]
      %v1067 = vld [vmem:[%s5 + $0x2e8] sm:$0xff]
      %v1068 = vld [vmem:[%s5 + $0x2f0] sm:$0xff]
      %v1069 = vld [vmem:[%s5 + $0x2f8] sm:$0xff]
      %v1070 = vld [vmem:[%s5 + $0x300] sm:$0xff]
      %v1071 = vld [vmem:[%s5 + $0x308] sm:$0xff]
      %v1072 = vld [vmem:[%s5 + $0x310] sm:$0xff]
      %v1073 = vld [vmem:[%s5 + $0x318] sm:$0xff]
      %v1074 = vld [vmem:[%s5 + $0x320] sm:$0xff]
      %v1075 = vld [vmem:[%s5 + $0x328] sm:$0xff]
      %v1076 = vld [vmem:[%s5 + $0x330] sm:$0xff]
      %v1077 = vld [vmem:[%s5 + $0x338] sm:$0xff]
      %v1078 = vld [vmem:[%s5 + $0x340] sm:$0xff]
      %v1079 = vld [vmem:[%s5 + $0x348] sm:$0xff]
      %v1080 = vld [vmem:[%s5 + $0x350] sm:$0xff]
      %v1081 = vld [vmem:[%s5 + $0x358] sm:$0xff]
      %v1082 = vld [vmem:[%s5 + $0x360] sm:$0xff]
      %v1083 = vld [vmem:[%s5 + $0x368] sm:$0xff]
      %v1084 = vld [vmem:[%s5 + $0x370] sm:$0xff]
      %v1085 = vld [vmem:[%s5 + $0x378] sm:$0xff]
      %v1086 = vld [vmem:[%s5 + $0x380] sm:$0xff]
      %v1087 = vld [vmem:[%s5 + $0x388] sm:$0xff]
      %v1088 = vld [vmem:[%s5 + $0x390] sm:$0xff]
      %v1089 = vld [vmem:[%s5 + $0x398] sm:$0xff]
      %v1090 = vld [vmem:[%s5 + $0x3a0] sm:$0xff]
      %v1091 = vld [vmem:[%s5 + $0x3a8] sm:$0xff]
      %v1092 = vld [vmem:[%s5 + $0x3b0] sm:$0xff]
      %v1093 = vld [vmem:[%s5 + $0x3b8] sm:$0xff]
      %vm1094 = vcmask 523264
      %v1096 = vsel %vm1094, %v961, 0
      %v1099 = vsel %vm1094, %v966, 0
      %v1102 = vsel %vm1094, %v971, 0
      %1104 = vmatprep.subr.mxu0 %v1020
      %1105 = vmatpush1.msra.mxu0 %v1019
      %1106 = vmatprep.subr.mxu0 %v1017
      %1107 = vmatpush1.msra.mxu0 %v1016
      %1108 = vmatprep.subr.mxu0 %v1014
      %1109 = vmatpush1.msra.mxu0 %v1013
      %1110 = vmatprep.subr.mxu0 %v1011
      %1111 = vmatpush1.msra.mxu0 %v1010
      %1112 = vmatprep.subr.mxu0 %v1008
      %1113 = vmatpush1.msra.mxu0 %v1007
      %1114 = vmatprep.subr.mxu0 %v1005
      %1115 = vmatpush1.msra.mxu0 %v1004
      %1116 = vmatprep.subr.mxu0 %v1002
      %1117 = vmatpush1.msra.mxu0 %v1001
      %1118 = vmatprep.subr.mxu0 %v999
      %1119 = vmatpush1.msra.mxu0 %v998
      %1120 = vmatprep.subr.mxu0 %v996
      %1121 = vmatpush1.msra.mxu0 %v995
      %1122 = vmatprep.subr.mxu0 %v993
      %1123 = vmatpush1.msra.mxu0 %v992
      %1124 = vmatprep.subr.mxu0 %v990
      %1125 = vmatpush1.msra.mxu0 %v989
      %1126 = vmatprep.subr.mxu0 %v987
      %1127 = vmatpush1.msra.mxu0 %v986
      %1128 = vmatprep.subr.mxu0 %v984
      %1129 = vmatpush1.msra.mxu0 %v983
      %1130 = vmatprep.subr.mxu0 %v981
      %1131 = vmatpush1.msra.mxu0 %v980
      %1132 = vmatprep.subr.mxu0 %v978
      %1133 = vmatpush1.msra.mxu0 %v977
      %1134 = vmatprep.subr.mxu0 %v975
      %1135 = vmatpush1.msra.mxu0 %v974
      %1136 = vmatprep.subr.mxu0 %v1068
      %1137 = vmatpush2.msra.mxu0 %v1067
      %1138 = vmatprep.subr.mxu0 %v1065
      %1139 = vmatpush2.msra.mxu0 %v1064
      %1140 = vmatprep.subr.mxu0 %v1062
      %1141 = vmatpush2.msra.mxu0 %v1061
      %1142 = vmatprep.subr.mxu0 %v1059
      %1143 = vmatpush2.msra.mxu0 %v1058
      %1144 = vmatprep.subr.mxu0 %v1056
      %1145 = vmatpush2.msra.mxu0 %v1055
      %1146 = vmatprep.subr.mxu0 %v1053
      %1147 = vmatpush2.msra.mxu0 %v1052
      %1148 = vmatprep.subr.mxu0 %v1050
      %1149 = vmatpush2.msra.mxu0 %v1049
      %1150 = vmatprep.subr.mxu0 %v1047
      %1151 = vmatpush2.msra.mxu0 %v1046
      %1152 = vmatprep.subr.mxu0 %v1044
      %1153 = vmatpush2.msra.mxu0 %v1043
      %1154 = vmatprep.subr.mxu0 %v1041
      %1155 = vmatpush2.msra.mxu0 %v1040
      %1156 = vmatprep.subr.mxu0 %v1038
      %1157 = vmatpush2.msra.mxu0 %v1037
      %1158 = vmatprep.subr.mxu0 %v1035
      %1159 = vmatpush2.msra.mxu0 %v1034
      %1160 = vmatprep.subr.mxu0 %v1032
      %1161 = vmatpush2.msra.mxu0 %v1031
      %1162 = vmatprep.subr.mxu0 %v1029
      %1163 = vmatpush2.msra.mxu0 %v1028
      %1164 = vmatprep.subr.mxu0 %v1026
      %1165 = vmatpush2.msra.mxu0 %v1025
      %1166 = vmatprep.subr.mxu0 %v1023
      %1167 = vmatpush2.msra.mxu0 %v1022
      %1168 = vmatprep.mubr.f32.mxu0 %v880
      %1169 = vmatmul.mubr.f32.gmra.mxu0 %v878
      %v1170 = vpop.f32.mrf.mxu0
      %v1171 = vadd.f32 0.0, %v1170
      %v1172 = vpop.f32.mrf.mxu0
      %v1173 = vadd.f32 0.0, %v1172
      %1174 = vmatprep.mubr.f32.mxu0 %v886
      %1175 = vmatmul.mubr.f32.gmra.mxu0 %v884
      %v1176 = vpop.f32.mrf.mxu0
      %v1177 = vadd.f32 0.0, %v1176
      %v1178 = vpop.f32.mrf.mxu0
      %v1179 = vadd.f32 0.0, %v1178
      %1180 = vmatprep.mubr.f32.mxu0 %v892
      %1181 = vmatmul.mubr.f32.gmra.mxu0 %v890
      %v1182 = vpop.f32.mrf.mxu0
      %v1183 = vadd.f32 0.0, %v1182
      %v1184 = vpop.f32.mrf.mxu0
      %v1185 = vadd.f32 0.0, %v1184
      %1186 = vdwg.mxu0
      %1187 = vmatprep.subr.mxu0 0.0
      %1188 = vmatpush1.msra.mxu0 0.0
      %1189 = vmatprep.subr.mxu0 0.0
      %1190 = vmatpush1.msra.mxu0 0.0
      %1191 = vmatprep.subr.mxu0 0.0
      %1192 = vmatpush1.msra.mxu0 0.0
      %1193 = vmatprep.subr.mxu0 0.0
      %1194 = vmatpush1.msra.mxu0 0.0
      %1195 = vmatprep.subr.mxu0 0.0
      %1196 = vmatpush1.msra.mxu0 0.0
      %1197 = vmatprep.subr.mxu0 0.0
      %1198 = vmatpush1.msra.mxu0 0.0
      %1199 = vmatprep.subr.mxu0 0.0
      %1200 = vmatpush1.msra.mxu0 0.0
      %1201 = vmatprep.subr.mxu0 0.0
      %1202 = vmatpush1.msra.mxu0 0.0
      %1203 = vmatprep.subr.mxu0 %v1092
      %1204 = vmatpush1.msra.mxu0 %v1091
      %1205 = vmatprep.subr.mxu0 %v1089
      %1206 = vmatpush1.msra.mxu0 %v1088
      %1207 = vmatprep.subr.mxu0 %v1086
      %1208 = vmatpush1.msra.mxu0 %v1085
      %1209 = vmatprep.subr.mxu0 %v1083
      %1210 = vmatpush1.msra.mxu0 %v1082
      %1211 = vmatprep.subr.mxu0 %v1080
      %1212 = vmatpush1.msra.mxu0 %v1079
      %1213 = vmatprep.subr.mxu0 %v1077
      %1214 = vmatpush1.msra.mxu0 %v1076
      %1215 = vmatprep.subr.mxu0 %v1074
      %1216 = vmatpush1.msra.mxu0 %v1073
      %1217 = vmatprep.subr.mxu0 %v1071
      %1218 = vmatpush1.msra.mxu0 %v1070
      %1219 = vmatprep.subr.mxu0 0.0
      %1220 = vmatpush2.msra.mxu0 0.0
      %1221 = vmatprep.subr.mxu0 0.0
      %1222 = vmatpush2.msra.mxu0 0.0
      %1223 = vmatprep.subr.mxu0 0.0
      %1224 = vmatpush2.msra.mxu0 0.0
      %1225 = vmatprep.subr.mxu0 0.0
      %1226 = vmatpush2.msra.mxu0 0.0
      %1227 = vmatprep.subr.mxu0 0.0
      %1228 = vmatpush2.msra.mxu0 0.0
      %1229 = vmatprep.subr.mxu0 0.0
      %1230 = vmatpush2.msra.mxu0 0.0
      %1231 = vmatprep.subr.mxu0 0.0
      %1232 = vmatpush2.msra.mxu0 0.0
      %1233 = vmatprep.subr.mxu0 0.0
      %1234 = vmatpush2.msra.mxu0 0.0
      %1235 = vmatprep.subr.mxu0 0.0
      %1236 = vmatpush2.msra.mxu0 0.0
      %1237 = vmatprep.subr.mxu0 0.0
      %1238 = vmatpush2.msra.mxu0 0.0
      %1239 = vmatprep.subr.mxu0 0.0
      %1240 = vmatpush2.msra.mxu0 0.0
      %1241 = vmatprep.subr.mxu0 0.0
      %1242 = vmatpush2.msra.mxu0 0.0
      %1243 = vmatprep.subr.mxu0 0.0
      %1244 = vmatpush2.msra.mxu0 0.0
      %1245 = vmatprep.subr.mxu0 0.0
      %1246 = vmatpush2.msra.mxu0 0.0
      %1247 = vmatprep.subr.mxu0 0.0
      %1248 = vmatpush2.msra.mxu0 0.0
      %1249 = vmatprep.subr.mxu0 0.0
      %1250 = vmatpush2.msra.mxu0 0.0
      %1251 = vmatprep.mubr.f32.mxu0 0.0
      %1252 = vmatmul.mubr.f32.gmra.mxu0 %v1096
      %v1253 = vpop.f32.mrf.mxu0
      %v1254 = vadd.f32 %v1171, %v1253
      %v1255 = vpop.f32.mrf.mxu0
      %v1256 = vadd.f32 %v1173, %v1255
      %1257 = vmatprep.mubr.f32.mxu0 0.0
      %1258 = vmatmul.mubr.f32.gmra.mxu0 %v1099
      %v1259 = vpop.f32.mrf.mxu0
      %v1260 = vadd.f32 %v1177, %v1259
      %v1261 = vpop.f32.mrf.mxu0
      %v1262 = vadd.f32 %v1179, %v1261
      %1263 = vmatprep.mubr.f32.mxu0 0.0
      %1264 = vmatmul.mubr.f32.gmra.mxu0 %v1102
      %v1265 = vpop.f32.mrf.mxu0
      %v1266 = vadd.f32 %v1183, %v1265
      %v1267 = vpop.f32.mrf.mxu0
      %v1268 = vadd.f32 %v1185, %v1267
      %1269 = vdwg.mxu0
      %1270 = vmatprep.subr.mxu0 0.0
      %1271 = vmatpush1.msra.mxu0 %v1021
      %1272 = vmatprep.subr.mxu0 0.0
      %1273 = vmatpush1.msra.mxu0 %v1018
      %1274 = vmatprep.subr.mxu0 0.0
      %1275 = vmatpush1.msra.mxu0 %v1015
      %1276 = vmatprep.subr.mxu0 0.0
      %1277 = vmatpush1.msra.mxu0 %v1012
      %1278 = vmatprep.subr.mxu0 0.0
      %1279 = vmatpush1.msra.mxu0 %v1009
      %1280 = vmatprep.subr.mxu0 0.0
      %1281 = vmatpush1.msra.mxu0 %v1006
      %1282 = vmatprep.subr.mxu0 0.0
      %1283 = vmatpush1.msra.mxu0 %v1003
      %1284 = vmatprep.subr.mxu0 0.0
      %1285 = vmatpush1.msra.mxu0 %v1000
      %1286 = vmatprep.subr.mxu0 0.0
      %1287 = vmatpush1.msra.mxu0 %v997
      %1288 = vmatprep.subr.mxu0 0.0
      %1289 = vmatpush1.msra.mxu0 %v994
      %1290 = vmatprep.subr.mxu0 0.0
      %1291 = vmatpush1.msra.mxu0 %v991
      %1292 = vmatprep.subr.mxu0 0.0
      %1293 = vmatpush1.msra.mxu0 %v988
      %1294 = vmatprep.subr.mxu0 0.0
      %1295 = vmatpush1.msra.mxu0 %v985
      %1296 = vmatprep.subr.mxu0 0.0
      %1297 = vmatpush1.msra.mxu0 %v982
      %1298 = vmatprep.subr.mxu0 0.0
      %1299 = vmatpush1.msra.mxu0 %v979
      %1300 = vmatprep.subr.mxu0 0.0
      %1301 = vmatpush1.msra.mxu0 %v976
      %1302 = vmatprep.subr.mxu0 0.0
      %1303 = vmatpush2.msra.mxu0 %v1069
      %1304 = vmatprep.subr.mxu0 0.0
      %1305 = vmatpush2.msra.mxu0 %v1066
      %1306 = vmatprep.subr.mxu0 0.0
      %1307 = vmatpush2.msra.mxu0 %v1063
      %1308 = vmatprep.subr.mxu0 0.0
      %1309 = vmatpush2.msra.mxu0 %v1060
      %1310 = vmatprep.subr.mxu0 0.0
      %1311 = vmatpush2.msra.mxu0 %v1057
      %1312 = vmatprep.subr.mxu0 0.0
      %1313 = vmatpush2.msra.mxu0 %v1054
      %1314 = vmatprep.subr.mxu0 0.0
      %1315 = vmatpush2.msra.mxu0 %v1051
      %1316 = vmatprep.subr.mxu0 0.0
      %1317 = vmatpush2.msra.mxu0 %v1048
      %1318 = vmatprep.subr.mxu0 0.0
      %1319 = vmatpush2.msra.mxu0 %v1045
      %1320 = vmatprep.subr.mxu0 0.0
      %1321 = vmatpush2.msra.mxu0 %v1042
      %1322 = vmatprep.subr.mxu0 0.0
      %1323 = vmatpush2.msra.mxu0 %v1039
      %1324 = vmatprep.subr.mxu0 0.0
      %1325 = vmatpush2.msra.mxu0 %v1036
      %1326 = vmatprep.subr.mxu0 0.0
      %1327 = vmatpush2.msra.mxu0 %v1033
      %1328 = vmatprep.subr.mxu0 0.0
      %1329 = vmatpush2.msra.mxu0 %v1030
      %1330 = vmatprep.subr.mxu0 0.0
      %1331 = vmatpush2.msra.mxu0 %v1027
      %1332 = vmatprep.subr.mxu0 0.0
      %1333 = vmatpush2.msra.mxu0 %v1024
      %1334 = vmatprep.mubr.f32.mxu0 %v880
      %1335 = vmatmul.mubr.f32.gmra.mxu0 %v878
      %v1336 = vpop.f32.mrf.mxu0
      %v1337 = vadd.f32 0.0, %v1336
      %v1338 = vpop.f32.mrf.mxu0
      %1339 = vmatprep.mubr.f32.mxu0 %v886
      %1340 = vmatmul.mubr.f32.gmra.mxu0 %v884
      %v1341 = vpop.f32.mrf.mxu0
      %v1342 = vadd.f32 0.0, %v1341
      %v1343 = vpop.f32.mrf.mxu0
      %1344 = vmatprep.mubr.f32.mxu0 %v892
      %1345 = vmatmul.mubr.f32.gmra.mxu0 %v890
      %v1346 = vpop.f32.mrf.mxu0
      %v1347 = vadd.f32 0.0, %v1346
      %v1348 = vpop.f32.mrf.mxu0
      %1349 = vdwg.mxu0
      %1350 = vmatprep.subr.mxu0 0.0
      %1351 = vmatpush1.msra.mxu0 0.0
      %1352 = vmatprep.subr.mxu0 0.0
      %1353 = vmatpush1.msra.mxu0 0.0
      %1354 = vmatprep.subr.mxu0 0.0
      %1355 = vmatpush1.msra.mxu0 0.0
      %1356 = vmatprep.subr.mxu0 0.0
      %1357 = vmatpush1.msra.mxu0 0.0
      %1358 = vmatprep.subr.mxu0 0.0
      %1359 = vmatpush1.msra.mxu0 0.0
      %1360 = vmatprep.subr.mxu0 0.0
      %1361 = vmatpush1.msra.mxu0 0.0
      %1362 = vmatprep.subr.mxu0 0.0
      %1363 = vmatpush1.msra.mxu0 0.0
      %1364 = vmatprep.subr.mxu0 0.0
      %1365 = vmatpush1.msra.mxu0 0.0
      %1366 = vmatprep.subr.mxu0 0.0
      %1367 = vmatpush1.msra.mxu0 %v1093
      %1368 = vmatprep.subr.mxu0 0.0
      %1369 = vmatpush1.msra.mxu0 %v1090
      %1370 = vmatprep.subr.mxu0 0.0
      %1371 = vmatpush1.msra.mxu0 %v1087
      %1372 = vmatprep.subr.mxu0 0.0
      %1373 = vmatpush1.msra.mxu0 %v1084
      %1374 = vmatprep.subr.mxu0 0.0
      %1375 = vmatpush1.msra.mxu0 %v1081
      %1376 = vmatprep.subr.mxu0 0.0
      %1377 = vmatpush1.msra.mxu0 %v1078
      %1378 = vmatprep.subr.mxu0 0.0
      %1379 = vmatpush1.msra.mxu0 %v1075
      %1380 = vmatprep.subr.mxu0 0.0
      %1381 = vmatpush1.msra.mxu0 %v1072
      %1382 = vmatprep.subr.mxu0 0.0
      %1383 = vmatpush2.msra.mxu0 0.0
      %1384 = vmatprep.subr.mxu0 0.0
      %1385 = vmatpush2.msra.mxu0 0.0
      %1386 = vmatprep.subr.mxu0 0.0
      %1387 = vmatpush2.msra.mxu0 0.0
      %1388 = vmatprep.subr.mxu0 0.0
      %1389 = vmatpush2.msra.mxu0 0.0
      %1390 = vmatprep.subr.mxu0 0.0
      %1391 = vmatpush2.msra.mxu0 0.0
      %1392 = vmatprep.subr.mxu0 0.0
      %1393 = vmatpush2.msra.mxu0 0.0
      %1394 = vmatprep.subr.mxu0 0.0
      %1395 = vmatpush2.msra.mxu0 0.0
      %1396 = vmatprep.subr.mxu0 0.0
      %1397 = vmatpush2.msra.mxu0 0.0
      %1398 = vmatprep.subr.mxu0 0.0
      %1399 = vmatpush2.msra.mxu0 0.0
      %1400 = vmatprep.subr.mxu0 0.0
      %1401 = vmatpush2.msra.mxu0 0.0
      %1402 = vmatprep.subr.mxu0 0.0
      %1403 = vmatpush2.msra.mxu0 0.0
      %1404 = vmatprep.subr.mxu0 0.0
      %1405 = vmatpush2.msra.mxu0 0.0
      %1406 = vmatprep.subr.mxu0 0.0
      %1407 = vmatpush2.msra.mxu0 0.0
      %1408 = vmatprep.subr.mxu0 0.0
      %1409 = vmatpush2.msra.mxu0 0.0
      %1410 = vmatprep.subr.mxu0 0.0
      %1411 = vmatpush2.msra.mxu0 0.0
      %1412 = vmatprep.subr.mxu0 0.0
      %1413 = vmatpush2.msra.mxu0 0.0
      %1414 = vmatprep.mubr.f32.mxu0 0.0
      %1415 = vmatmul.mubr.f32.gmra.mxu0 %v1096
      %v1416 = vpop.f32.mrf.mxu0
      %v1417 = vadd.f32 %v1337, %v1416
      %v1418 = vpop.f32.mrf.mxu0
      %1419 = vmatprep.mubr.f32.mxu0 0.0
      %1420 = vmatmul.mubr.f32.gmra.mxu0 %v1099
      %v1421 = vpop.f32.mrf.mxu0
      %v1422 = vadd.f32 %v1342, %v1421
      %v1423 = vpop.f32.mrf.mxu0
      %1424 = vmatprep.mubr.f32.mxu0 0.0
      %1425 = vmatmul.mubr.f32.gmra.mxu0 %v1102
      %v1426 = vpop.f32.mrf.mxu0
      %v1427 = vadd.f32 %v1347, %v1426
      %v1428 = vpop.f32.mrf.mxu0
      %1429 = vdwg.mxu0
      %v1430 = vld [vmem:[%s6] sm:$0xff]
      %v1431 = vld [vmem:[%s6 + $0x8] sm:$0xff]
      %v1432 = vld [vmem:[%s6 + $0x10] sm:$0xff]
      %v1433 = vld [vmem:[%s6 + $0x18] sm:$0xff]
      %v1434 = vld [vmem:[%s6 + $0x20] sm:$0xff]
      %v1435 = vld [vmem:[%s6 + $0x28] sm:$0xff]
      %v1436 = vld [vmem:[%s6 + $0x30] sm:$0x3f]
      %v1437 = vld [vmem:[%s6 + $0x38] sm:$0x3f]
      %v1438 = vld [vmem:[%s6 + $0x40] sm:$0x3f]
      %v1439 = vmul.f32 %v1254, %v1430
      %v1440 = vmul.f32 %v1256, %v1431
      %v1441 = vmul.f32 %v1417, %v1432
      %v1442 = vmul.f32 %v1260, %v1433
      %v1443 = vmul.f32 %v1262, %v1434
      %v1444 = vmul.f32 %v1422, %v1435
      %v1445 = vmul.f32 %v1266, %v1436
      %v1446 = vmul.f32 %v1268, %v1437
      %v1447 = vmul.f32 %v1427, %v1438
      %s1448 = scalar_lea.vmem %s6, 72
      %v1449 = vld [vmem:[%s1448] sm:$0xff]
      %v1450 = vld [vmem:[%s1448 + $0x8] sm:$0xff]
      %v1451 = vld [vmem:[%s1448 + $0x10] sm:$0xff]
      %v1452 = vld [vmem:[%s1448 + $0x18] sm:$0xff]
      %v1453 = vld [vmem:[%s1448 + $0x20] sm:$0xff]
      %v1454 = vld [vmem:[%s1448 + $0x28] sm:$0xff]
      %v1455 = vld [vmem:[%s1448 + $0x30] sm:$0x3f]
      %v1456 = vld [vmem:[%s1448 + $0x38] sm:$0x3f]
      %v1457 = vld [vmem:[%s1448 + $0x40] sm:$0x3f]
      %v1458 = vadd.f32 %v1439, %v1449
      %v1459 = vadd.f32 %v1440, %v1450
      %v1460 = vadd.f32 %v1441, %v1451
      %v1461 = vadd.f32 %v1442, %v1452
      %v1462 = vadd.f32 %v1443, %v1453
      %v1463 = vadd.f32 %v1444, %v1454
      %v1464 = vadd.f32 %v1445, %v1455
      %v1465 = vadd.f32 %v1446, %v1456
      %v1466 = vadd.f32 %v1447, %v1457
      %v1467 = vtanh.pop %v1458
      %v1468 = vtanh.pop %v1459
      %v1469 = vtanh.pop %v1460
      %v1470 = vtanh.pop %v1461
      %v1471 = vtanh.pop %v1462
      %v1472 = vtanh.pop %v1463
      %v1473 = vtanh.pop %v1464
      %v1474 = vtanh.pop %v1465
      %v1475 = vtanh.pop %v1466
      %v1476 = vld [vmem:[%s7] sm:$0xff]
      %v1477 = vld [vmem:[%s7 + $0x8] sm:$0xff]
      %v1478 = vld [vmem:[%s7 + $0x10] sm:$0x3f]
      %v1480 = vsel %vm447, %v1476, 0
      %v1483 = vsel %vm447, %v1477, 0
      %v1486 = vsel %vm447, %v1478, 0
      %v1489 = vsel %vm457, %v1473, 0
      %v1492 = vsel %vm457, %v1474, 0
      %v1495 = vsel %vm457, %v1475, 0
      %1497 = vmatprep.subr.mxu0 0.0
      %1498 = vmatpush1.msra.mxu0 0.0
      %1499 = vmatprep.subr.mxu0 0.0
      %1500 = vmatpush1.msra.mxu0 0.0
      %1501 = vmatprep.subr.mxu0 0.0
      %1502 = vmatpush1.msra.mxu0 0.0
      %1503 = vmatprep.subr.mxu0 0.0
      %1504 = vmatpush1.msra.mxu0 0.0
      %1505 = vmatprep.subr.mxu0 0.0
      %1506 = vmatpush1.msra.mxu0 0.0
      %1507 = vmatprep.subr.mxu0 0.0
      %1508 = vmatpush1.msra.mxu0 0.0
      %1509 = vmatprep.subr.mxu0 0.0
      %1510 = vmatpush1.msra.mxu0 0.0
      %1511 = vmatprep.subr.mxu0 0.0
      %1512 = vmatpush1.msra.mxu0 0.0
      %1513 = vmatprep.subr.mxu0 0.0
      %1514 = vmatpush1.msra.mxu0 0.0
      %1515 = vmatprep.subr.mxu0 0.0
      %1516 = vmatpush1.msra.mxu0 0.0
      %1517 = vmatprep.subr.mxu0 0.0
      %1518 = vmatpush1.msra.mxu0 0.0
      %1519 = vmatprep.subr.mxu0 0.0
      %1520 = vmatpush1.msra.mxu0 0.0
      %1521 = vmatprep.subr.mxu0 0.0
      %1522 = vmatpush1.msra.mxu0 0.0
      %1523 = vmatprep.subr.mxu0 %v1492
      %1524 = vmatpush1.msra.mxu0 %v1489
      %1525 = vmatprep.subr.mxu0 %v1471
      %1526 = vmatpush1.msra.mxu0 %v1470
      %1527 = vmatprep.subr.mxu0 %v1468
      %1528 = vmatpush1.msra.mxu0 %v1467
      %1529 = vmatprep.subr.mxu0 0.0
      %1530 = vmatpush2.msra.mxu0 0.0
      %1531 = vmatprep.subr.mxu0 0.0
      %1532 = vmatpush2.msra.mxu0 0.0
      %1533 = vmatprep.subr.mxu0 0.0
      %1534 = vmatpush2.msra.mxu0 0.0
      %1535 = vmatprep.subr.mxu0 0.0
      %1536 = vmatpush2.msra.mxu0 0.0
      %1537 = vmatprep.subr.mxu0 0.0
      %1538 = vmatpush2.msra.mxu0 0.0
      %1539 = vmatprep.subr.mxu0 0.0
      %1540 = vmatpush2.msra.mxu0 0.0
      %1541 = vmatprep.subr.mxu0 0.0
      %1542 = vmatpush2.msra.mxu0 0.0
      %1543 = vmatprep.subr.mxu0 0.0
      %1544 = vmatpush2.msra.mxu0 0.0
      %1545 = vmatprep.subr.mxu0 0.0
      %1546 = vmatpush2.msra.mxu0 0.0
      %1547 = vmatprep.subr.mxu0 0.0
      %1548 = vmatpush2.msra.mxu0 0.0
      %1549 = vmatprep.subr.mxu0 0.0
      %1550 = vmatpush2.msra.mxu0 0.0
      %1551 = vmatprep.subr.mxu0 0.0
      %1552 = vmatpush2.msra.mxu0 0.0
      %1553 = vmatprep.subr.mxu0 0.0
      %1554 = vmatpush2.msra.mxu0 0.0
      %1555 = vmatprep.subr.mxu0 0.0
      %1556 = vmatpush2.msra.mxu0 0.0
      %1557 = vmatprep.subr.mxu0 0.0
      %1558 = vmatpush2.msra.mxu0 0.0
      %1559 = vmatprep.subr.mxu0 0.0
      %1560 = vmatpush2.msra.mxu0 0.0
      %1561 = vmatprep.mubr.f32.mxu0 0.0
      %1562 = vmatmul.mubr.f32.gmra.mxu0 %v1480
      %v1563 = vpop.f32.mrf.mxu0
      %v1564 = vadd.f32 0.0, %v1563
      %v1565 = vpop.f32.mrf.mxu0
      %v1566 = vadd.f32 0.0, %v1565
      %1567 = vmatprep.mubr.f32.mxu0 0.0
      %1568 = vmatmul.mubr.f32.gmra.mxu0 %v1483
      %v1569 = vpop.f32.mrf.mxu0
      %v1570 = vadd.f32 0.0, %v1569
      %v1571 = vpop.f32.mrf.mxu0
      %v1572 = vadd.f32 0.0, %v1571
      %1573 = vmatprep.mubr.f32.mxu0 0.0
      %1574 = vmatmul.mubr.f32.gmra.mxu0 %v1486
      %v1575 = vpop.f32.mrf.mxu0
      %v1576 = vadd.f32 0.0, %v1575
      %v1577 = vpop.f32.mrf.mxu0
      %v1578 = vadd.f32 0.0, %v1577
      %1579 = vdwg.mxu0
      %1580 = vmatprep.subr.mxu0 0.0
      %1581 = vmatpush1.msra.mxu0 0.0
      %1582 = vmatprep.subr.mxu0 0.0
      %1583 = vmatpush1.msra.mxu0 0.0
      %1584 = vmatprep.subr.mxu0 0.0
      %1585 = vmatpush1.msra.mxu0 0.0
      %1586 = vmatprep.subr.mxu0 0.0
      %1587 = vmatpush1.msra.mxu0 0.0
      %1588 = vmatprep.subr.mxu0 0.0
      %1589 = vmatpush1.msra.mxu0 0.0
      %1590 = vmatprep.subr.mxu0 0.0
      %1591 = vmatpush1.msra.mxu0 0.0
      %1592 = vmatprep.subr.mxu0 0.0
      %1593 = vmatpush1.msra.mxu0 0.0
      %1594 = vmatprep.subr.mxu0 0.0
      %1595 = vmatpush1.msra.mxu0 0.0
      %1596 = vmatprep.subr.mxu0 0.0
      %1597 = vmatpush1.msra.mxu0 0.0
      %1598 = vmatprep.subr.mxu0 0.0
      %1599 = vmatpush1.msra.mxu0 0.0
      %1600 = vmatprep.subr.mxu0 0.0
      %1601 = vmatpush1.msra.mxu0 0.0
      %1602 = vmatprep.subr.mxu0 0.0
      %1603 = vmatpush1.msra.mxu0 0.0
      %1604 = vmatprep.subr.mxu0 0.0
      %1605 = vmatpush1.msra.mxu0 0.0
      %1606 = vmatprep.subr.mxu0 0.0
      %1607 = vmatpush1.msra.mxu0 %v1495
      %1608 = vmatprep.subr.mxu0 0.0
      %1609 = vmatpush1.msra.mxu0 %v1472
      %1610 = vmatprep.subr.mxu0 0.0
      %1611 = vmatpush1.msra.mxu0 %v1469
      %1612 = vmatprep.subr.mxu0 0.0
      %1613 = vmatpush2.msra.mxu0 0.0
      %1614 = vmatprep.subr.mxu0 0.0
      %1615 = vmatpush2.msra.mxu0 0.0
      %1616 = vmatprep.subr.mxu0 0.0
      %1617 = vmatpush2.msra.mxu0 0.0
      %1618 = vmatprep.subr.mxu0 0.0
      %1619 = vmatpush2.msra.mxu0 0.0
      %1620 = vmatprep.subr.mxu0 0.0
      %1621 = vmatpush2.msra.mxu0 0.0
      %1622 = vmatprep.subr.mxu0 0.0
      %1623 = vmatpush2.msra.mxu0 0.0
      %1624 = vmatprep.subr.mxu0 0.0
      %1625 = vmatpush2.msra.mxu0 0.0
      %1626 = vmatprep.subr.mxu0 0.0
      %1627 = vmatpush2.msra.mxu0 0.0
      %1628 = vmatprep.subr.mxu0 0.0
      %1629 = vmatpush2.msra.mxu0 0.0
      %1630 = vmatprep.subr.mxu0 0.0
      %1631 = vmatpush2.msra.mxu0 0.0
      %1632 = vmatprep.subr.mxu0 0.0
      %1633 = vmatpush2.msra.mxu0 0.0
      %1634 = vmatprep.subr.mxu0 0.0
      %1635 = vmatpush2.msra.mxu0 0.0
      %1636 = vmatprep.subr.mxu0 0.0
      %1637 = vmatpush2.msra.mxu0 0.0
      %1638 = vmatprep.subr.mxu0 0.0
      %1639 = vmatpush2.msra.mxu0 0.0
      %1640 = vmatprep.subr.mxu0 0.0
      %1641 = vmatpush2.msra.mxu0 0.0
      %1642 = vmatprep.subr.mxu0 0.0
      %1643 = vmatpush2.msra.mxu0 0.0
      %1644 = vmatprep.mubr.f32.mxu0 0.0
      %1645 = vmatmul.mubr.f32.gmra.mxu0 %v1480
      %v1646 = vpop.f32.mrf.mxu0
      %v1647 = vadd.f32 0.0, %v1646
      %v1648 = vpop.f32.mrf.mxu0
      %1649 = vmatprep.mubr.f32.mxu0 0.0
      %1650 = vmatmul.mubr.f32.gmra.mxu0 %v1483
      %v1651 = vpop.f32.mrf.mxu0
      %v1652 = vadd.f32 0.0, %v1651
      %v1653 = vpop.f32.mrf.mxu0
      %1654 = vmatprep.mubr.f32.mxu0 0.0
      %1655 = vmatmul.mubr.f32.gmra.mxu0 %v1486
      %v1656 = vpop.f32.mrf.mxu0
      %v1657 = vadd.f32 0.0, %v1656
      %v1658 = vpop.f32.mrf.mxu0
      %1659 = vdwg.mxu0
      %v1660 = vld [vmem:[%s8] sm:$0xff]
      %v1661 = vld [vmem:[%s8 + $0x8] sm:$0xff]
      %v1662 = vld [vmem:[%s8 + $0x10] sm:$0xff]
      %v1663 = vld [vmem:[%s8 + $0x18] sm:$0xff]
      %v1664 = vld [vmem:[%s8 + $0x20] sm:$0xff]
      %v1665 = vld [vmem:[%s8 + $0x28] sm:$0xff]
      %v1666 = vld [vmem:[%s8 + $0x30] sm:$0xff]
      %v1667 = vld [vmem:[%s8 + $0x38] sm:$0xff]
      %v1668 = vld [vmem:[%s8 + $0x40] sm:$0xff]
      %v1669 = vld [vmem:[%s8 + $0x48] sm:$0xff]
      %v1670 = vld [vmem:[%s8 + $0x50] sm:$0xff]
      %v1671 = vld [vmem:[%s8 + $0x58] sm:$0xff]
      %v1672 = vld [vmem:[%s8 + $0x60] sm:$0xff]
      %v1673 = vld [vmem:[%s8 + $0x68] sm:$0xff]
      %v1674 = vld [vmem:[%s8 + $0x70] sm:$0xff]
      %v1675 = vld [vmem:[%s8 + $0x78] sm:$0xff]
      %v1676 = vld [vmem:[%s8 + $0x80] sm:$0xff]
      %v1677 = vld [vmem:[%s8 + $0x88] sm:$0xff]
      %v1678 = vld [vmem:[%s8 + $0x90] sm:$0xff]
      %v1679 = vld [vmem:[%s8 + $0x98] sm:$0xff]
      %v1680 = vld [vmem:[%s8 + $0xa0] sm:$0xff]
      %v1681 = vld [vmem:[%s8 + $0xa8] sm:$0xff]
      %v1682 = vld [vmem:[%s8 + $0xb0] sm:$0xff]
      %v1683 = vld [vmem:[%s8 + $0xb8] sm:$0xff]
      %v1684 = vld [vmem:[%s8 + $0xc0] sm:$0xff]
      %v1685 = vld [vmem:[%s8 + $0xc8] sm:$0xff]
      %v1686 = vld [vmem:[%s8 + $0xd0] sm:$0xff]
      %v1687 = vld [vmem:[%s8 + $0xd8] sm:$0xff]
      %v1688 = vld [vmem:[%s8 + $0xe0] sm:$0xff]
      %v1689 = vld [vmem:[%s8 + $0xe8] sm:$0xff]
      %v1690 = vld [vmem:[%s8 + $0xf0] sm:$0xff]
      %v1691 = vld [vmem:[%s8 + $0xf8] sm:$0xff]
      %v1692 = vld [vmem:[%s8 + $0x100] sm:$0xff]
      %v1693 = vld [vmem:[%s8 + $0x108] sm:$0xff]
      %v1694 = vld [vmem:[%s8 + $0x110] sm:$0xff]
      %v1695 = vld [vmem:[%s8 + $0x118] sm:$0xff]
      %v1696 = vld [vmem:[%s8 + $0x120] sm:$0xff]
      %v1697 = vld [vmem:[%s8 + $0x128] sm:$0xff]
      %v1698 = vld [vmem:[%s8 + $0x130] sm:$0xff]
      %v1699 = vld [vmem:[%s8 + $0x138] sm:$0xff]
      %v1700 = vld [vmem:[%s8 + $0x140] sm:$0xff]
      %v1701 = vld [vmem:[%s8 + $0x148] sm:$0xff]
      %v1702 = vld [vmem:[%s8 + $0x150] sm:$0xff]
      %v1703 = vld [vmem:[%s8 + $0x158] sm:$0xff]
      %v1704 = vld [vmem:[%s8 + $0x160] sm:$0xff]
      %v1705 = vld [vmem:[%s8 + $0x168] sm:$0xff]
      %v1706 = vld [vmem:[%s8 + $0x170] sm:$0xff]
      %v1707 = vld [vmem:[%s8 + $0x178] sm:$0xff]
      %v1708 = vld [vmem:[%s8 + $0x180] sm:$0xff]
      %v1709 = vld [vmem:[%s8 + $0x188] sm:$0xff]
      %v1710 = vld [vmem:[%s8 + $0x190] sm:$0xff]
      %v1711 = vld [vmem:[%s8 + $0x198] sm:$0xff]
      %v1712 = vld [vmem:[%s8 + $0x1a0] sm:$0xff]
      %v1713 = vld [vmem:[%s8 + $0x1a8] sm:$0xff]
      %v1714 = vld [vmem:[%s8 + $0x1b0] sm:$0xff]
      %v1715 = vld [vmem:[%s8 + $0x1b8] sm:$0xff]
      %v1716 = vld [vmem:[%s8 + $0x1c0] sm:$0xff]
      %v1717 = vld [vmem:[%s8 + $0x1c8] sm:$0xff]
      %v1718 = vld [vmem:[%s8 + $0x1d0] sm:$0xff]
      %v1719 = vld [vmem:[%s8 + $0x1d8] sm:$0xff]
      %v1720 = vld [vmem:[%s8 + $0x1e0] sm:$0xff]
      %v1721 = vld [vmem:[%s8 + $0x1e8] sm:$0xff]
      %v1722 = vld [vmem:[%s8 + $0x1f0] sm:$0xff]
      %v1723 = vld [vmem:[%s8 + $0x1f8] sm:$0xff]
      %v1724 = vld [vmem:[%s8 + $0x200] sm:$0xff]
      %v1725 = vld [vmem:[%s8 + $0x208] sm:$0xff]
      %v1726 = vld [vmem:[%s8 + $0x210] sm:$0xff]
      %v1727 = vld [vmem:[%s8 + $0x218] sm:$0xff]
      %v1728 = vld [vmem:[%s8 + $0x220] sm:$0xff]
      %v1729 = vld [vmem:[%s8 + $0x228] sm:$0xff]
      %v1730 = vld [vmem:[%s8 + $0x230] sm:$0xff]
      %v1731 = vld [vmem:[%s8 + $0x238] sm:$0xff]
      %v1732 = vld [vmem:[%s8 + $0x240] sm:$0xff]
      %v1733 = vld [vmem:[%s8 + $0x248] sm:$0xff]
      %v1734 = vld [vmem:[%s8 + $0x250] sm:$0xff]
      %v1735 = vld [vmem:[%s8 + $0x258] sm:$0xff]
      %v1736 = vld [vmem:[%s8 + $0x260] sm:$0xff]
      %v1737 = vld [vmem:[%s8 + $0x268] sm:$0xff]
      %v1738 = vld [vmem:[%s8 + $0x270] sm:$0xff]
      %v1739 = vld [vmem:[%s8 + $0x278] sm:$0xff]
      %v1740 = vld [vmem:[%s8 + $0x280] sm:$0xff]
      %v1741 = vld [vmem:[%s8 + $0x288] sm:$0xff]
      %v1742 = vld [vmem:[%s8 + $0x290] sm:$0xff]
      %v1743 = vld [vmem:[%s8 + $0x298] sm:$0xff]
      %v1744 = vld [vmem:[%s8 + $0x2a0] sm:$0xff]
      %v1745 = vld [vmem:[%s8 + $0x2a8] sm:$0xff]
      %v1746 = vld [vmem:[%s8 + $0x2b0] sm:$0xff]
      %v1747 = vld [vmem:[%s8 + $0x2b8] sm:$0xff]
      %v1748 = vld [vmem:[%s8 + $0x2c0] sm:$0xff]
      %v1749 = vld [vmem:[%s8 + $0x2c8] sm:$0xff]
      %v1750 = vld [vmem:[%s8 + $0x2d0] sm:$0xff]
      %v1751 = vld [vmem:[%s8 + $0x2d8] sm:$0xff]
      %v1752 = vld [vmem:[%s8 + $0x2e0] sm:$0xff]
      %v1753 = vld [vmem:[%s8 + $0x2e8] sm:$0xff]
      %v1754 = vld [vmem:[%s8 + $0x2f0] sm:$0xff]
      %v1755 = vld [vmem:[%s8 + $0x2f8] sm:$0xff]
      %v1756 = vld [vmem:[%s8 + $0x300] sm:$0xff]
      %v1757 = vld [vmem:[%s8 + $0x308] sm:$0xff]
      %v1758 = vld [vmem:[%s8 + $0x310] sm:$0xff]
      %v1759 = vld [vmem:[%s8 + $0x318] sm:$0xff]
      %v1760 = vld [vmem:[%s8 + $0x320] sm:$0xff]
      %v1761 = vld [vmem:[%s8 + $0x328] sm:$0xff]
      %v1762 = vld [vmem:[%s8 + $0x330] sm:$0xff]
      %v1763 = vld [vmem:[%s8 + $0x338] sm:$0xff]
      %v1764 = vld [vmem:[%s8 + $0x340] sm:$0xff]
      %v1765 = vld [vmem:[%s8 + $0x348] sm:$0xff]
      %v1766 = vld [vmem:[%s8 + $0x350] sm:$0xff]
      %v1767 = vld [vmem:[%s8 + $0x358] sm:$0xff]
      %v1768 = vld [vmem:[%s8 + $0x360] sm:$0xff]
      %v1769 = vld [vmem:[%s8 + $0x368] sm:$0xff]
      %v1770 = vld [vmem:[%s8 + $0x370] sm:$0xff]
      %v1771 = vld [vmem:[%s8 + $0x378] sm:$0xff]
      %v1772 = vld [vmem:[%s8 + $0x380] sm:$0xff]
      %v1773 = vld [vmem:[%s8 + $0x388] sm:$0xff]
      %v1774 = vld [vmem:[%s8 + $0x390] sm:$0xff]
      %v1775 = vld [vmem:[%s8 + $0x398] sm:$0xff]
      %v1776 = vld [vmem:[%s8 + $0x3a0] sm:$0xff]
      %v1777 = vld [vmem:[%s8 + $0x3a8] sm:$0xff]
      %v1778 = vld [vmem:[%s8 + $0x3b0] sm:$0xff]
      %v1779 = vld [vmem:[%s8 + $0x3b8] sm:$0xff]
      %v1781 = vsel %vm1094, %v1647, 0
      %v1784 = vsel %vm1094, %v1652, 0
      %v1787 = vsel %vm1094, %v1657, 0
      %1789 = vmatprep.subr.mxu0 %v1706
      %1790 = vmatpush1.msra.mxu0 %v1705
      %1791 = vmatprep.subr.mxu0 %v1703
      %1792 = vmatpush1.msra.mxu0 %v1702
      %1793 = vmatprep.subr.mxu0 %v1700
      %1794 = vmatpush1.msra.mxu0 %v1699
      %1795 = vmatprep.subr.mxu0 %v1697
      %1796 = vmatpush1.msra.mxu0 %v1696
      %1797 = vmatprep.subr.mxu0 %v1694
      %1798 = vmatpush1.msra.mxu0 %v1693
      %1799 = vmatprep.subr.mxu0 %v1691
      %1800 = vmatpush1.msra.mxu0 %v1690
      %1801 = vmatprep.subr.mxu0 %v1688
      %1802 = vmatpush1.msra.mxu0 %v1687
      %1803 = vmatprep.subr.mxu0 %v1685
      %1804 = vmatpush1.msra.mxu0 %v1684
      %1805 = vmatprep.subr.mxu0 %v1682
      %1806 = vmatpush1.msra.mxu0 %v1681
      %1807 = vmatprep.subr.mxu0 %v1679
      %1808 = vmatpush1.msra.mxu0 %v1678
      %1809 = vmatprep.subr.mxu0 %v1676
      %1810 = vmatpush1.msra.mxu0 %v1675
      %1811 = vmatprep.subr.mxu0 %v1673
      %1812 = vmatpush1.msra.mxu0 %v1672
      %1813 = vmatprep.subr.mxu0 %v1670
      %1814 = vmatpush1.msra.mxu0 %v1669
      %1815 = vmatprep.subr.mxu0 %v1667
      %1816 = vmatpush1.msra.mxu0 %v1666
      %1817 = vmatprep.subr.mxu0 %v1664
      %1818 = vmatpush1.msra.mxu0 %v1663
      %1819 = vmatprep.subr.mxu0 %v1661
      %1820 = vmatpush1.msra.mxu0 %v1660
      %1821 = vmatprep.subr.mxu0 %v1754
      %1822 = vmatpush2.msra.mxu0 %v1753
      %1823 = vmatprep.subr.mxu0 %v1751
      %1824 = vmatpush2.msra.mxu0 %v1750
      %1825 = vmatprep.subr.mxu0 %v1748
      %1826 = vmatpush2.msra.mxu0 %v1747
      %1827 = vmatprep.subr.mxu0 %v1745
      %1828 = vmatpush2.msra.mxu0 %v1744
      %1829 = vmatprep.subr.mxu0 %v1742
      %1830 = vmatpush2.msra.mxu0 %v1741
      %1831 = vmatprep.subr.mxu0 %v1739
      %1832 = vmatpush2.msra.mxu0 %v1738
      %1833 = vmatprep.subr.mxu0 %v1736
      %1834 = vmatpush2.msra.mxu0 %v1735
      %1835 = vmatprep.subr.mxu0 %v1733
      %1836 = vmatpush2.msra.mxu0 %v1732
      %1837 = vmatprep.subr.mxu0 %v1730
      %1838 = vmatpush2.msra.mxu0 %v1729
      %1839 = vmatprep.subr.mxu0 %v1727
      %1840 = vmatpush2.msra.mxu0 %v1726
      %1841 = vmatprep.subr.mxu0 %v1724
      %1842 = vmatpush2.msra.mxu0 %v1723
      %1843 = vmatprep.subr.mxu0 %v1721
      %1844 = vmatpush2.msra.mxu0 %v1720
      %1845 = vmatprep.subr.mxu0 %v1718
      %1846 = vmatpush2.msra.mxu0 %v1717
      %1847 = vmatprep.subr.mxu0 %v1715
      %1848 = vmatpush2.msra.mxu0 %v1714
      %1849 = vmatprep.subr.mxu0 %v1712
      %1850 = vmatpush2.msra.mxu0 %v1711
      %1851 = vmatprep.subr.mxu0 %v1709
      %1852 = vmatpush2.msra.mxu0 %v1708
      %1853 = vmatprep.mubr.f32.mxu0 %v1566
      %1854 = vmatmul.mubr.f32.gmra.mxu0 %v1564
      %v1855 = vpop.f32.mrf.mxu0
      %v1856 = vadd.f32 0.0, %v1855
      %v1857 = vpop.f32.mrf.mxu0
      %v1858 = vadd.f32 0.0, %v1857
      %1859 = vmatprep.mubr.f32.mxu0 %v1572
      %1860 = vmatmul.mubr.f32.gmra.mxu0 %v1570
      %v1861 = vpop.f32.mrf.mxu0
      %v1862 = vadd.f32 0.0, %v1861
      %v1863 = vpop.f32.mrf.mxu0
      %v1864 = vadd.f32 0.0, %v1863
      %1865 = vmatprep.mubr.f32.mxu0 %v1578
      %1866 = vmatmul.mubr.f32.gmra.mxu0 %v1576
      %v1867 = vpop.f32.mrf.mxu0
      %v1868 = vadd.f32 0.0, %v1867
      %v1869 = vpop.f32.mrf.mxu0
      %v1870 = vadd.f32 0.0, %v1869
      %1871 = vdwg.mxu0
      %1872 = vmatprep.subr.mxu0 0.0
      %1873 = vmatpush1.msra.mxu0 0.0
      %1874 = vmatprep.subr.mxu0 0.0
      %1875 = vmatpush1.msra.mxu0 0.0
      %1876 = vmatprep.subr.mxu0 0.0
      %1877 = vmatpush1.msra.mxu0 0.0
      %1878 = vmatprep.subr.mxu0 0.0
      %1879 = vmatpush1.msra.mxu0 0.0
      %1880 = vmatprep.subr.mxu0 0.0
      %1881 = vmatpush1.msra.mxu0 0.0
      %1882 = vmatprep.subr.mxu0 0.0
      %1883 = vmatpush1.msra.mxu0 0.0
      %1884 = vmatprep.subr.mxu0 0.0
      %1885 = vmatpush1.msra.mxu0 0.0
      %1886 = vmatprep.subr.mxu0 0.0
      %1887 = vmatpush1.msra.mxu0 0.0
      %1888 = vmatprep.subr.mxu0 %v1778
      %1889 = vmatpush1.msra.mxu0 %v1777
      %1890 = vmatprep.subr.mxu0 %v1775
      %1891 = vmatpush1.msra.mxu0 %v1774
      %1892 = vmatprep.subr.mxu0 %v1772
      %1893 = vmatpush1.msra.mxu0 %v1771
      %1894 = vmatprep.subr.mxu0 %v1769
      %1895 = vmatpush1.msra.mxu0 %v1768
      %1896 = vmatprep.subr.mxu0 %v1766
      %1897 = vmatpush1.msra.mxu0 %v1765
      %1898 = vmatprep.subr.mxu0 %v1763
      %1899 = vmatpush1.msra.mxu0 %v1762
      %1900 = vmatprep.subr.mxu0 %v1760
      %1901 = vmatpush1.msra.mxu0 %v1759
      %1902 = vmatprep.subr.mxu0 %v1757
      %1903 = vmatpush1.msra.mxu0 %v1756
      %1904 = vmatprep.subr.mxu0 0.0
      %1905 = vmatpush2.msra.mxu0 0.0
      %1906 = vmatprep.subr.mxu0 0.0
      %1907 = vmatpush2.msra.mxu0 0.0
      %1908 = vmatprep.subr.mxu0 0.0
      %1909 = vmatpush2.msra.mxu0 0.0
      %1910 = vmatprep.subr.mxu0 0.0
      %1911 = vmatpush2.msra.mxu0 0.0
      %1912 = vmatprep.subr.mxu0 0.0
      %1913 = vmatpush2.msra.mxu0 0.0
      %1914 = vmatprep.subr.mxu0 0.0
      %1915 = vmatpush2.msra.mxu0 0.0
      %1916 = vmatprep.subr.mxu0 0.0
      %1917 = vmatpush2.msra.mxu0 0.0
      %1918 = vmatprep.subr.mxu0 0.0
      %1919 = vmatpush2.msra.mxu0 0.0
      %1920 = vmatprep.subr.mxu0 0.0
      %1921 = vmatpush2.msra.mxu0 0.0
      %1922 = vmatprep.subr.mxu0 0.0
      %1923 = vmatpush2.msra.mxu0 0.0
      %1924 = vmatprep.subr.mxu0 0.0
      %1925 = vmatpush2.msra.mxu0 0.0
      %1926 = vmatprep.subr.mxu0 0.0
      %1927 = vmatpush2.msra.mxu0 0.0
      %1928 = vmatprep.subr.mxu0 0.0
      %1929 = vmatpush2.msra.mxu0 0.0
      %1930 = vmatprep.subr.mxu0 0.0
      %1931 = vmatpush2.msra.mxu0 0.0
      %1932 = vmatprep.subr.mxu0 0.0
      %1933 = vmatpush2.msra.mxu0 0.0
      %1934 = vmatprep.subr.mxu0 0.0
      %1935 = vmatpush2.msra.mxu0 0.0
      %1936 = vmatprep.mubr.f32.mxu0 0.0
      %1937 = vmatmul.mubr.f32.gmra.mxu0 %v1781
      %v1938 = vpop.f32.mrf.mxu0
      %v1939 = vadd.f32 %v1856, %v1938
      %v1940 = vpop.f32.mrf.mxu0
      %v1941 = vadd.f32 %v1858, %v1940
      %1942 = vmatprep.mubr.f32.mxu0 0.0
      %1943 = vmatmul.mubr.f32.gmra.mxu0 %v1784
      %v1944 = vpop.f32.mrf.mxu0
      %v1945 = vadd.f32 %v1862, %v1944
      %v1946 = vpop.f32.mrf.mxu0
      %v1947 = vadd.f32 %v1864, %v1946
      %1948 = vmatprep.mubr.f32.mxu0 0.0
      %1949 = vmatmul.mubr.f32.gmra.mxu0 %v1787
      %v1950 = vpop.f32.mrf.mxu0
      %v1951 = vadd.f32 %v1868, %v1950
      %v1952 = vpop.f32.mrf.mxu0
      %v1953 = vadd.f32 %v1870, %v1952
      %1954 = vdwg.mxu0
      %1955 = vmatprep.subr.mxu0 0.0
      %1956 = vmatpush1.msra.mxu0 %v1707
      %1957 = vmatprep.subr.mxu0 0.0
      %1958 = vmatpush1.msra.mxu0 %v1704
      %1959 = vmatprep.subr.mxu0 0.0
      %1960 = vmatpush1.msra.mxu0 %v1701
      %1961 = vmatprep.subr.mxu0 0.0
      %1962 = vmatpush1.msra.mxu0 %v1698
      %1963 = vmatprep.subr.mxu0 0.0
      %1964 = vmatpush1.msra.mxu0 %v1695
      %1965 = vmatprep.subr.mxu0 0.0
      %1966 = vmatpush1.msra.mxu0 %v1692
      %1967 = vmatprep.subr.mxu0 0.0
      %1968 = vmatpush1.msra.mxu0 %v1689
      %1969 = vmatprep.subr.mxu0 0.0
      %1970 = vmatpush1.msra.mxu0 %v1686
      %1971 = vmatprep.subr.mxu0 0.0
      %1972 = vmatpush1.msra.mxu0 %v1683
      %1973 = vmatprep.subr.mxu0 0.0
      %1974 = vmatpush1.msra.mxu0 %v1680
      %1975 = vmatprep.subr.mxu0 0.0
      %1976 = vmatpush1.msra.mxu0 %v1677
      %1977 = vmatprep.subr.mxu0 0.0
      %1978 = vmatpush1.msra.mxu0 %v1674
      %1979 = vmatprep.subr.mxu0 0.0
      %1980 = vmatpush1.msra.mxu0 %v1671
      %1981 = vmatprep.subr.mxu0 0.0
      %1982 = vmatpush1.msra.mxu0 %v1668
      %1983 = vmatprep.subr.mxu0 0.0
      %1984 = vmatpush1.msra.mxu0 %v1665
      %1985 = vmatprep.subr.mxu0 0.0
      %1986 = vmatpush1.msra.mxu0 %v1662
      %1987 = vmatprep.subr.mxu0 0.0
      %1988 = vmatpush2.msra.mxu0 %v1755
      %1989 = vmatprep.subr.mxu0 0.0
      %1990 = vmatpush2.msra.mxu0 %v1752
      %1991 = vmatprep.subr.mxu0 0.0
      %1992 = vmatpush2.msra.mxu0 %v1749
      %1993 = vmatprep.subr.mxu0 0.0
      %1994 = vmatpush2.msra.mxu0 %v1746
      %1995 = vmatprep.subr.mxu0 0.0
      %1996 = vmatpush2.msra.mxu0 %v1743
      %1997 = vmatprep.subr.mxu0 0.0
      %1998 = vmatpush2.msra.mxu0 %v1740
      %1999 = vmatprep.subr.mxu0 0.0
      %2000 = vmatpush2.msra.mxu0 %v1737
      %2001 = vmatprep.subr.mxu0 0.0
      %2002 = vmatpush2.msra.mxu0 %v1734
      %2003 = vmatprep.subr.mxu0 0.0
      %2004 = vmatpush2.msra.mxu0 %v1731
      %2005 = vmatprep.subr.mxu0 0.0
      %2006 = vmatpush2.msra.mxu0 %v1728
      %2007 = vmatprep.subr.mxu0 0.0
      %2008 = vmatpush2.msra.mxu0 %v1725
      %2009 = vmatprep.subr.mxu0 0.0
      %2010 = vmatpush2.msra.mxu0 %v1722
      %2011 = vmatprep.subr.mxu0 0.0
      %2012 = vmatpush2.msra.mxu0 %v1719
      %2013 = vmatprep.subr.mxu0 0.0
      %2014 = vmatpush2.msra.mxu0 %v1716
      %2015 = vmatprep.subr.mxu0 0.0
      %2016 = vmatpush2.msra.mxu0 %v1713
      %2017 = vmatprep.subr.mxu0 0.0
      %2018 = vmatpush2.msra.mxu0 %v1710
      %2019 = vmatprep.mubr.f32.mxu0 %v1566
      %2020 = vmatmul.mubr.f32.gmra.mxu0 %v1564
      %v2021 = vpop.f32.mrf.mxu0
      %v2022 = vadd.f32 0.0, %v2021
      %v2023 = vpop.f32.mrf.mxu0
      %2024 = vmatprep.mubr.f32.mxu0 %v1572
      %2025 = vmatmul.mubr.f32.gmra.mxu0 %v1570
      %v2026 = vpop.f32.mrf.mxu0
      %v2027 = vadd.f32 0.0, %v2026
      %v2028 = vpop.f32.mrf.mxu0
      %2029 = vmatprep.mubr.f32.mxu0 %v1578
      %2030 = vmatmul.mubr.f32.gmra.mxu0 %v1576
      %v2031 = vpop.f32.mrf.mxu0
      %v2032 = vadd.f32 0.0, %v2031
      %v2033 = vpop.f32.mrf.mxu0
      %2034 = vdwg.mxu0
      %2035 = vmatprep.subr.mxu0 0.0
      %2036 = vmatpush1.msra.mxu0 0.0
      %2037 = vmatprep.subr.mxu0 0.0
      %2038 = vmatpush1.msra.mxu0 0.0
      %2039 = vmatprep.subr.mxu0 0.0
      %2040 = vmatpush1.msra.mxu0 0.0
      %2041 = vmatprep.subr.mxu0 0.0
      %2042 = vmatpush1.msra.mxu0 0.0
      %2043 = vmatprep.subr.mxu0 0.0
      %2044 = vmatpush1.msra.mxu0 0.0
      %2045 = vmatprep.subr.mxu0 0.0
      %2046 = vmatpush1.msra.mxu0 0.0
      %2047 = vmatprep.subr.mxu0 0.0
      %2048 = vmatpush1.msra.mxu0 0.0
      %2049 = vmatprep.subr.mxu0 0.0
      %2050 = vmatpush1.msra.mxu0 0.0
      %2051 = vmatprep.subr.mxu0 0.0
      %2052 = vmatpush1.msra.mxu0 %v1779
      %2053 = vmatprep.subr.mxu0 0.0
      %2054 = vmatpush1.msra.mxu0 %v1776
      %2055 = vmatprep.subr.mxu0 0.0
      %2056 = vmatpush1.msra.mxu0 %v1773
      %2057 = vmatprep.subr.mxu0 0.0
      %2058 = vmatpush1.msra.mxu0 %v1770
      %2059 = vmatprep.subr.mxu0 0.0
      %2060 = vmatpush1.msra.mxu0 %v1767
      %2061 = vmatprep.subr.mxu0 0.0
      %2062 = vmatpush1.msra.mxu0 %v1764
      %2063 = vmatprep.subr.mxu0 0.0
      %2064 = vmatpush1.msra.mxu0 %v1761
      %2065 = vmatprep.subr.mxu0 0.0
      %2066 = vmatpush1.msra.mxu0 %v1758
      %2067 = vmatprep.subr.mxu0 0.0
      %2068 = vmatpush2.msra.mxu0 0.0
      %2069 = vmatprep.subr.mxu0 0.0
      %2070 = vmatpush2.msra.mxu0 0.0
      %2071 = vmatprep.subr.mxu0 0.0
      %2072 = vmatpush2.msra.mxu0 0.0
      %2073 = vmatprep.subr.mxu0 0.0
      %2074 = vmatpush2.msra.mxu0 0.0
      %2075 = vmatprep.subr.mxu0 0.0
      %2076 = vmatpush2.msra.mxu0 0.0
      %2077 = vmatprep.subr.mxu0 0.0
      %2078 = vmatpush2.msra.mxu0 0.0
      %2079 = vmatprep.subr.mxu0 0.0
      %2080 = vmatpush2.msra.mxu0 0.0
      %2081 = vmatprep.subr.mxu0 0.0
      %2082 = vmatpush2.msra.mxu0 0.0
      %2083 = vmatprep.subr.mxu0 0.0
      %2084 = vmatpush2.msra.mxu0 0.0
      %2085 = vmatprep.subr.mxu0 0.0
      %2086 = vmatpush2.msra.mxu0 0.0
      %2087 = vmatprep.subr.mxu0 0.0
      %2088 = vmatpush2.msra.mxu0 0.0
      %2089 = vmatprep.subr.mxu0 0.0
      %2090 = vmatpush2.msra.mxu0 0.0
      %2091 = vmatprep.subr.mxu0 0.0
      %2092 = vmatpush2.msra.mxu0 0.0
      %2093 = vmatprep.subr.mxu0 0.0
      %2094 = vmatpush2.msra.mxu0 0.0
      %2095 = vmatprep.subr.mxu0 0.0
      %2096 = vmatpush2.msra.mxu0 0.0
      %2097 = vmatprep.subr.mxu0 0.0
      %2098 = vmatpush2.msra.mxu0 0.0
      %2099 = vmatprep.mubr.f32.mxu0 0.0
      %2100 = vmatmul.mubr.f32.gmra.mxu0 %v1781
      %v2101 = vpop.f32.mrf.mxu0
      %v2102 = vadd.f32 %v2022, %v2101
      %v2103 = vpop.f32.mrf.mxu0
      %2104 = vmatprep.mubr.f32.mxu0 0.0
      %2105 = vmatmul.mubr.f32.gmra.mxu0 %v1784
      %v2106 = vpop.f32.mrf.mxu0
      %v2107 = vadd.f32 %v2027, %v2106
      %v2108 = vpop.f32.mrf.mxu0
      %2109 = vmatprep.mubr.f32.mxu0 0.0
      %2110 = vmatmul.mubr.f32.gmra.mxu0 %v1787
      %v2111 = vpop.f32.mrf.mxu0
      %v2112 = vadd.f32 %v2032, %v2111
      %v2113 = vpop.f32.mrf.mxu0
      %2114 = vdwg.mxu0
      %v2115 = vld [vmem:[%s9] sm:$0xff]
      %v2116 = vld [vmem:[%s9 + $0x8] sm:$0xff]
      %v2117 = vld [vmem:[%s9 + $0x10] sm:$0xff]
      %v2118 = vld [vmem:[%s9 + $0x18] sm:$0xff]
      %v2119 = vld [vmem:[%s9 + $0x20] sm:$0xff]
      %v2120 = vld [vmem:[%s9 + $0x28] sm:$0xff]
      %v2121 = vld [vmem:[%s9 + $0x30] sm:$0x3f]
      %v2122 = vld [vmem:[%s9 + $0x38] sm:$0x3f]
      %v2123 = vld [vmem:[%s9 + $0x40] sm:$0x3f]
      %v2124 = vmul.f32 %v1939, %v2115
      %v2125 = vmul.f32 %v1941, %v2116
      %v2126 = vmul.f32 %v2102, %v2117
      %v2127 = vmul.f32 %v1945, %v2118
      %v2128 = vmul.f32 %v1947, %v2119
      %v2129 = vmul.f32 %v2107, %v2120
      %v2130 = vmul.f32 %v1951, %v2121
      %v2131 = vmul.f32 %v1953, %v2122
      %v2132 = vmul.f32 %v2112, %v2123
      %s2133 = scalar_lea.vmem %s9, 72
      %v2134 = vld [vmem:[%s2133] sm:$0xff]
      %v2135 = vld [vmem:[%s2133 + $0x8] sm:$0xff]
      %v2136 = vld [vmem:[%s2133 + $0x10] sm:$0xff]
      %v2137 = vld [vmem:[%s2133 + $0x18] sm:$0xff]
      %v2138 = vld [vmem:[%s2133 + $0x20] sm:$0xff]
      %v2139 = vld [vmem:[%s2133 + $0x28] sm:$0xff]
      %v2140 = vld [vmem:[%s2133 + $0x30] sm:$0x3f]
      %v2141 = vld [vmem:[%s2133 + $0x38] sm:$0x3f]
      %v2142 = vld [vmem:[%s2133 + $0x40] sm:$0x3f]
      %v2143 = vadd.f32 %v2124, %v2134
      %v2144 = vadd.f32 %v2125, %v2135
      %v2145 = vadd.f32 %v2126, %v2136
      %v2146 = vadd.f32 %v2127, %v2137
      %v2147 = vadd.f32 %v2128, %v2138
      %v2148 = vadd.f32 %v2129, %v2139
      %v2149 = vadd.f32 %v2130, %v2140
      %v2150 = vadd.f32 %v2131, %v2141
      %v2151 = vadd.f32 %v2132, %v2142
      %v2152 = vtanh.pop %v2143
      %v2153 = vtanh.pop %v2144
      %v2154 = vtanh.pop %v2145
      %v2155 = vtanh.pop %v2146
      %v2156 = vtanh.pop %v2147
      %v2157 = vtanh.pop %v2148
      %v2158 = vtanh.pop %v2149
      %v2159 = vtanh.pop %v2150
      %v2160 = vtanh.pop %v2151
      %v2161 = vadd.f32 %v2152, %v781
      %v2162 = vadd.f32 %v2153, %v782
      %v2163 = vadd.f32 %v2154, %v783
      %v2164 = vadd.f32 %v2155, %v784
      %v2165 = vadd.f32 %v2156, %v785
      %v2166 = vadd.f32 %v2157, %v786
      %v2167 = vadd.f32 %v2158, %v787
      %v2168 = vadd.f32 %v2159, %v788
      %v2169 = vadd.f32 %v2160, %v789
      %v2170 = vld [vmem:[%s10] sm:$0xff]
      %v2171 = vld [vmem:[%s10 + $0x8] sm:$0xff]
      %v2172 = vld [vmem:[%s10 + $0x10] sm:$0x3f]
      %v2174 = vsel %vm447, %v2170, 0
      %v2177 = vsel %vm447, %v2171, 0
      %v2180 = vsel %vm447, %v2172, 0
      %v2183 = vsel %vm457, %v2167, 0
      %v2186 = vsel %vm457, %v2168, 0
      %v2189 = vsel %vm457, %v2169, 0
      %2191 = vmatprep.subr.mxu0 0.0
      %2192 = vmatpush1.msra.mxu0 0.0
      %2193 = vmatprep.subr.mxu0 0.0
      %2194 = vmatpush1.msra.mxu0 0.0
      %2195 = vmatprep.subr.mxu0 0.0
      %2196 = vmatpush1.msra.mxu0 0.0
      %2197 = vmatprep.subr.mxu0 0.0
      %2198 = vmatpush1.msra.mxu0 0.0
      %2199 = vmatprep.subr.mxu0 0.0
      %2200 = vmatpush1.msra.mxu0 0.0
      %2201 = vmatprep.subr.mxu0 0.0
      %2202 = vmatpush1.msra.mxu0 0.0
      %2203 = vmatprep.subr.mxu0 0.0
      %2204 = vmatpush1.msra.mxu0 0.0
      %2205 = vmatprep.subr.mxu0 0.0
      %2206 = vmatpush1.msra.mxu0 0.0
      %2207 = vmatprep.subr.mxu0 0.0
      %2208 = vmatpush1.msra.mxu0 0.0
      %2209 = vmatprep.subr.mxu0 0.0
      %2210 = vmatpush1.msra.mxu0 0.0
      %2211 = vmatprep.subr.mxu0 0.0
      %2212 = vmatpush1.msra.mxu0 0.0
      %2213 = vmatprep.subr.mxu0 0.0
      %2214 = vmatpush1.msra.mxu0 0.0
      %2215 = vmatprep.subr.mxu0 0.0
      %2216 = vmatpush1.msra.mxu0 0.0
      %2217 = vmatprep.subr.mxu0 %v2186
      %2218 = vmatpush1.msra.mxu0 %v2183
      %2219 = vmatprep.subr.mxu0 %v2165
      %2220 = vmatpush1.msra.mxu0 %v2164
      %2221 = vmatprep.subr.mxu0 %v2162
      %2222 = vmatpush1.msra.mxu0 %v2161
      %2223 = vmatprep.subr.mxu0 0.0
      %2224 = vmatpush2.msra.mxu0 0.0
      %2225 = vmatprep.subr.mxu0 0.0
      %2226 = vmatpush2.msra.mxu0 0.0
      %2227 = vmatprep.subr.mxu0 0.0
      %2228 = vmatpush2.msra.mxu0 0.0
      %2229 = vmatprep.subr.mxu0 0.0
      %2230 = vmatpush2.msra.mxu0 0.0
      %2231 = vmatprep.subr.mxu0 0.0
      %2232 = vmatpush2.msra.mxu0 0.0
      %2233 = vmatprep.subr.mxu0 0.0
      %2234 = vmatpush2.msra.mxu0 0.0
      %2235 = vmatprep.subr.mxu0 0.0
      %2236 = vmatpush2.msra.mxu0 0.0
      %2237 = vmatprep.subr.mxu0 0.0
      %2238 = vmatpush2.msra.mxu0 0.0
      %2239 = vmatprep.subr.mxu0 0.0
      %2240 = vmatpush2.msra.mxu0 0.0
      %2241 = vmatprep.subr.mxu0 0.0
      %2242 = vmatpush2.msra.mxu0 0.0
      %2243 = vmatprep.subr.mxu0 0.0
      %2244 = vmatpush2.msra.mxu0 0.0
      %2245 = vmatprep.subr.mxu0 0.0
      %2246 = vmatpush2.msra.mxu0 0.0
      %2247 = vmatprep.subr.mxu0 0.0
      %2248 = vmatpush2.msra.mxu0 0.0
      %2249 = vmatprep.subr.mxu0 0.0
      %2250 = vmatpush2.msra.mxu0 0.0
      %2251 = vmatprep.subr.mxu0 0.0
      %2252 = vmatpush2.msra.mxu0 0.0
      %2253 = vmatprep.subr.mxu0 0.0
      %2254 = vmatpush2.msra.mxu0 0.0
      %2255 = vmatprep.mubr.f32.mxu0 0.0
      %2256 = vmatmul.mubr.f32.gmra.mxu0 %v2174
      %v2257 = vpop.f32.mrf.mxu0
      %v2258 = vadd.f32 0.0, %v2257
      %v2259 = vpop.f32.mrf.mxu0
      %v2260 = vadd.f32 0.0, %v2259
      %2261 = vmatprep.mubr.f32.mxu0 0.0
      %2262 = vmatmul.mubr.f32.gmra.mxu0 %v2177
      %v2263 = vpop.f32.mrf.mxu0
      %v2264 = vadd.f32 0.0, %v2263
      %v2265 = vpop.f32.mrf.mxu0
      %v2266 = vadd.f32 0.0, %v2265
      %2267 = vmatprep.mubr.f32.mxu0 0.0
      %2268 = vmatmul.mubr.f32.gmra.mxu0 %v2180
      %v2269 = vpop.f32.mrf.mxu0
      %v2270 = vadd.f32 0.0, %v2269
      %v2271 = vpop.f32.mrf.mxu0
      %v2272 = vadd.f32 0.0, %v2271
      %2273 = vdwg.mxu0
      %2274 = vmatprep.subr.mxu0 0.0
      %2275 = vmatpush1.msra.mxu0 0.0
      %2276 = vmatprep.subr.mxu0 0.0
      %2277 = vmatpush1.msra.mxu0 0.0
      %2278 = vmatprep.subr.mxu0 0.0
      %2279 = vmatpush1.msra.mxu0 0.0
      %2280 = vmatprep.subr.mxu0 0.0
      %2281 = vmatpush1.msra.mxu0 0.0
      %2282 = vmatprep.subr.mxu0 0.0
      %2283 = vmatpush1.msra.mxu0 0.0
      %2284 = vmatprep.subr.mxu0 0.0
      %2285 = vmatpush1.msra.mxu0 0.0
      %2286 = vmatprep.subr.mxu0 0.0
      %2287 = vmatpush1.msra.mxu0 0.0
      %2288 = vmatprep.subr.mxu0 0.0
      %2289 = vmatpush1.msra.mxu0 0.0
      %2290 = vmatprep.subr.mxu0 0.0
      %2291 = vmatpush1.msra.mxu0 0.0
      %2292 = vmatprep.subr.mxu0 0.0
      %2293 = vmatpush1.msra.mxu0 0.0
      %2294 = vmatprep.subr.mxu0 0.0
      %2295 = vmatpush1.msra.mxu0 0.0
      %2296 = vmatprep.subr.mxu0 0.0
      %2297 = vmatpush1.msra.mxu0 0.0
      %2298 = vmatprep.subr.mxu0 0.0
      %2299 = vmatpush1.msra.mxu0 0.0
      %2300 = vmatprep.subr.mxu0 0.0
      %2301 = vmatpush1.msra.mxu0 %v2189
      %2302 = vmatprep.subr.mxu0 0.0
      %2303 = vmatpush1.msra.mxu0 %v2166
      %2304 = vmatprep.subr.mxu0 0.0
      %2305 = vmatpush1.msra.mxu0 %v2163
      %2306 = vmatprep.subr.mxu0 0.0
      %2307 = vmatpush2.msra.mxu0 0.0
      %2308 = vmatprep.subr.mxu0 0.0
      %2309 = vmatpush2.msra.mxu0 0.0
      %2310 = vmatprep.subr.mxu0 0.0
      %2311 = vmatpush2.msra.mxu0 0.0
      %2312 = vmatprep.subr.mxu0 0.0
      %2313 = vmatpush2.msra.mxu0 0.0
      %2314 = vmatprep.subr.mxu0 0.0
      %2315 = vmatpush2.msra.mxu0 0.0
      %2316 = vmatprep.subr.mxu0 0.0
      %2317 = vmatpush2.msra.mxu0 0.0
      %2318 = vmatprep.subr.mxu0 0.0
      %2319 = vmatpush2.msra.mxu0 0.0
      %2320 = vmatprep.subr.mxu0 0.0
      %2321 = vmatpush2.msra.mxu0 0.0
      %2322 = vmatprep.subr.mxu0 0.0
      %2323 = vmatpush2.msra.mxu0 0.0
      %2324 = vmatprep.subr.mxu0 0.0
      %2325 = vmatpush2.msra.mxu0 0.0
      %2326 = vmatprep.subr.mxu0 0.0
      %2327 = vmatpush2.msra.mxu0 0.0
      %2328 = vmatprep.subr.mxu0 0.0
      %2329 = vmatpush2.msra.mxu0 0.0
      %2330 = vmatprep.subr.mxu0 0.0
      %2331 = vmatpush2.msra.mxu0 0.0
      %2332 = vmatprep.subr.mxu0 0.0
      %2333 = vmatpush2.msra.mxu0 0.0
      %2334 = vmatprep.subr.mxu0 0.0
      %2335 = vmatpush2.msra.mxu0 0.0
      %2336 = vmatprep.subr.mxu0 0.0
      %2337 = vmatpush2.msra.mxu0 0.0
      %2338 = vmatprep.mubr.f32.mxu0 0.0
      %2339 = vmatmul.mubr.f32.gmra.mxu0 %v2174
      %v2340 = vpop.f32.mrf.mxu0
      %v2341 = vadd.f32 0.0, %v2340
      %v2342 = vpop.f32.mrf.mxu0
      %2343 = vmatprep.mubr.f32.mxu0 0.0
      %2344 = vmatmul.mubr.f32.gmra.mxu0 %v2177
      %v2345 = vpop.f32.mrf.mxu0
      %v2346 = vadd.f32 0.0, %v2345
      %v2347 = vpop.f32.mrf.mxu0
      %2348 = vmatprep.mubr.f32.mxu0 0.0
      %2349 = vmatmul.mubr.f32.gmra.mxu0 %v2180
      %v2350 = vpop.f32.mrf.mxu0
      %v2351 = vadd.f32 0.0, %v2350
      %v2352 = vpop.f32.mrf.mxu0
      %2353 = vdwg.mxu0
      %v2354 = vld [vmem:[%s11] sm:$0xff]
      %v2355 = vld [vmem:[%s11 + $0x8] sm:$0xff]
      %v2356 = vld [vmem:[%s11 + $0x10] sm:$0xff]
      %v2357 = vld [vmem:[%s11 + $0x18] sm:$0xff]
      %v2358 = vld [vmem:[%s11 + $0x20] sm:$0xff]
      %v2359 = vld [vmem:[%s11 + $0x28] sm:$0xff]
      %v2360 = vld [vmem:[%s11 + $0x30] sm:$0xff]
      %v2361 = vld [vmem:[%s11 + $0x38] sm:$0xff]
      %v2362 = vld [vmem:[%s11 + $0x40] sm:$0xff]
      %v2363 = vld [vmem:[%s11 + $0x48] sm:$0xff]
      %v2364 = vld [vmem:[%s11 + $0x50] sm:$0xff]
      %v2365 = vld [vmem:[%s11 + $0x58] sm:$0xff]
      %v2366 = vld [vmem:[%s11 + $0x60] sm:$0xff]
      %v2367 = vld [vmem:[%s11 + $0x68] sm:$0xff]
      %v2368 = vld [vmem:[%s11 + $0x70] sm:$0xff]
      %v2369 = vld [vmem:[%s11 + $0x78] sm:$0xff]
      %v2370 = vld [vmem:[%s11 + $0x80] sm:$0xff]
      %v2371 = vld [vmem:[%s11 + $0x88] sm:$0xff]
      %v2372 = vld [vmem:[%s11 + $0x90] sm:$0xff]
      %v2373 = vld [vmem:[%s11 + $0x98] sm:$0xff]
      %v2374 = vld [vmem:[%s11 + $0xa0] sm:$0xff]
      %v2375 = vld [vmem:[%s11 + $0xa8] sm:$0xff]
      %v2376 = vld [vmem:[%s11 + $0xb0] sm:$0xff]
      %v2377 = vld [vmem:[%s11 + $0xb8] sm:$0xff]
      %v2378 = vld [vmem:[%s11 + $0xc0] sm:$0xff]
      %v2379 = vld [vmem:[%s11 + $0xc8] sm:$0xff]
      %v2380 = vld [vmem:[%s11 + $0xd0] sm:$0xff]
      %v2381 = vld [vmem:[%s11 + $0xd8] sm:$0xff]
      %v2382 = vld [vmem:[%s11 + $0xe0] sm:$0xff]
      %v2383 = vld [vmem:[%s11 + $0xe8] sm:$0xff]
      %v2384 = vld [vmem:[%s11 + $0xf0] sm:$0xff]
      %v2385 = vld [vmem:[%s11 + $0xf8] sm:$0xff]
      %v2386 = vld [vmem:[%s11 + $0x100] sm:$0xff]
      %v2387 = vld [vmem:[%s11 + $0x108] sm:$0xff]
      %v2388 = vld [vmem:[%s11 + $0x110] sm:$0xff]
      %v2389 = vld [vmem:[%s11 + $0x118] sm:$0xff]
      %v2390 = vld [vmem:[%s11 + $0x120] sm:$0xff]
      %v2391 = vld [vmem:[%s11 + $0x128] sm:$0xff]
      %v2392 = vld [vmem:[%s11 + $0x130] sm:$0xff]
      %v2393 = vld [vmem:[%s11 + $0x138] sm:$0xff]
      %v2394 = vld [vmem:[%s12] sm:$0x1]
      %v2396 = vlaneseq
      %v2397 = vshrl.u32 %v2396, 7
      %v2398 = vsub.s32 0, %v2397
      %v2399 = vrot.slane %v2394, %v2398
      %v2402 = vsel %vm1094, %v2341, 0
      %v2405 = vsel %vm1094, %v2346, 0
      %v2408 = vsel %vm1094, %v2351, 0
      %2410 = vmatprep.subr.mxu0 0.0
      %2411 = vmatpush1.msra.mxu0 %v2369
      %2412 = vmatprep.subr.mxu0 0.0
      %2413 = vmatpush1.msra.mxu0 %v2368
      %2414 = vmatprep.subr.mxu0 0.0
      %2415 = vmatpush1.msra.mxu0 %v2367
      %2416 = vmatprep.subr.mxu0 0.0
      %2417 = vmatpush1.msra.mxu0 %v2366
      %2418 = vmatprep.subr.mxu0 0.0
      %2419 = vmatpush1.msra.mxu0 %v2365
      %2420 = vmatprep.subr.mxu0 0.0
      %2421 = vmatpush1.msra.mxu0 %v2364
      %2422 = vmatprep.subr.mxu0 0.0
      %2423 = vmatpush1.msra.mxu0 %v2363
      %2424 = vmatprep.subr.mxu0 0.0
      %2425 = vmatpush1.msra.mxu0 %v2362
      %2426 = vmatprep.subr.mxu0 0.0
      %2427 = vmatpush1.msra.mxu0 %v2361
      %2428 = vmatprep.subr.mxu0 0.0
      %2429 = vmatpush1.msra.mxu0 %v2360
      %2430 = vmatprep.subr.mxu0 0.0
      %2431 = vmatpush1.msra.mxu0 %v2359
      %2432 = vmatprep.subr.mxu0 0.0
      %2433 = vmatpush1.msra.mxu0 %v2358
      %2434 = vmatprep.subr.mxu0 0.0
      %2435 = vmatpush1.msra.mxu0 %v2357
      %2436 = vmatprep.subr.mxu0 0.0
      %2437 = vmatpush1.msra.mxu0 %v2356
      %2438 = vmatprep.subr.mxu0 0.0
      %2439 = vmatpush1.msra.mxu0 %v2355
      %2440 = vmatprep.subr.mxu0 0.0
      %2441 = vmatpush1.msra.mxu0 %v2354
      %2442 = vmatprep.subr.mxu0 0.0
      %2443 = vmatpush2.msra.mxu0 %v2385
      %2444 = vmatprep.subr.mxu0 0.0
      %2445 = vmatpush2.msra.mxu0 %v2384
      %2446 = vmatprep.subr.mxu0 0.0
      %2447 = vmatpush2.msra.mxu0 %v2383
      %2448 = vmatprep.subr.mxu0 0.0
      %2449 = vmatpush2.msra.mxu0 %v2382
      %2450 = vmatprep.subr.mxu0 0.0
      %2451 = vmatpush2.msra.mxu0 %v2381
      %2452 = vmatprep.subr.mxu0 0.0
      %2453 = vmatpush2.msra.mxu0 %v2380
      %2454 = vmatprep.subr.mxu0 0.0
      %2455 = vmatpush2.msra.mxu0 %v2379
      %2456 = vmatprep.subr.mxu0 0.0
      %2457 = vmatpush2.msra.mxu0 %v2378
      %2458 = vmatprep.subr.mxu0 0.0
      %2459 = vmatpush2.msra.mxu0 %v2377
      %2460 = vmatprep.subr.mxu0 0.0
      %2461 = vmatpush2.msra.mxu0 %v2376
      %2462 = vmatprep.subr.mxu0 0.0
      %2463 = vmatpush2.msra.mxu0 %v2375
      %2464 = vmatprep.subr.mxu0 0.0
      %2465 = vmatpush2.msra.mxu0 %v2374
      %2466 = vmatprep.subr.mxu0 0.0
      %2467 = vmatpush2.msra.mxu0 %v2373
      %2468 = vmatprep.subr.mxu0 0.0
      %2469 = vmatpush2.msra.mxu0 %v2372
      %2470 = vmatprep.subr.mxu0 0.0
      %2471 = vmatpush2.msra.mxu0 %v2371
      %2472 = vmatprep.subr.mxu0 0.0
      %2473 = vmatpush2.msra.mxu0 %v2370
      %2474 = vmatprep.mubr.f32.mxu0 %v2260
      %2475 = vmatmul.mubr.f32.gmra.mxu0 %v2258
      %v2476 = vpop.f32.mrf.mxu0
      %v2477 = vadd.f32 %v2399, %v2476
      %v2478 = vpop.f32.mrf.mxu0
      %2479 = vmatprep.mubr.f32.mxu0 %v2266
      %2480 = vmatmul.mubr.f32.gmra.mxu0 %v2264
      %v2481 = vpop.f32.mrf.mxu0
      %v2482 = vadd.f32 %v2399, %v2481
      %v2483 = vpop.f32.mrf.mxu0
      %2484 = vmatprep.mubr.f32.mxu0 %v2272
      %2485 = vmatmul.mubr.f32.gmra.mxu0 %v2270
      %v2486 = vpop.f32.mrf.mxu0
      %v2487 = vadd.f32 %v2399, %v2486
      %v2488 = vpop.f32.mrf.mxu0
      %2489 = vdwg.mxu0
      %2490 = vmatprep.subr.mxu0 0.0
      %2491 = vmatpush1.msra.mxu0 0.0
      %2492 = vmatprep.subr.mxu0 0.0
      %2493 = vmatpush1.msra.mxu0 0.0
      %2494 = vmatprep.subr.mxu0 0.0
      %2495 = vmatpush1.msra.mxu0 0.0
      %2496 = vmatprep.subr.mxu0 0.0
      %2497 = vmatpush1.msra.mxu0 0.0
      %2498 = vmatprep.subr.mxu0 0.0
      %2499 = vmatpush1.msra.mxu0 0.0
      %2500 = vmatprep.subr.mxu0 0.0
      %2501 = vmatpush1.msra.mxu0 0.0
      %2502 = vmatprep.subr.mxu0 0.0
      %2503 = vmatpush1.msra.mxu0 0.0
      %2504 = vmatprep.subr.mxu0 0.0
      %2505 = vmatpush1.msra.mxu0 0.0
      %2506 = vmatprep.subr.mxu0 0.0
      %2507 = vmatpush1.msra.mxu0 %v2393
      %2508 = vmatprep.subr.mxu0 0.0
      %2509 = vmatpush1.msra.mxu0 %v2392
      %2510 = vmatprep.subr.mxu0 0.0
      %2511 = vmatpush1.msra.mxu0 %v2391
      %2512 = vmatprep.subr.mxu0 0.0
      %2513 = vmatpush1.msra.mxu0 %v2390
      %2514 = vmatprep.subr.mxu0 0.0
      %2515 = vmatpush1.msra.mxu0 %v2389
      %2516 = vmatprep.subr.mxu0 0.0
      %2517 = vmatpush1.msra.mxu0 %v2388
      %2518 = vmatprep.subr.mxu0 0.0
      %2519 = vmatpush1.msra.mxu0 %v2387
      %2520 = vmatprep.subr.mxu0 0.0
      %2521 = vmatpush1.msra.mxu0 %v2386
      %2522 = vmatprep.subr.mxu0 0.0
      %2523 = vmatpush2.msra.mxu0 0.0
      %2524 = vmatprep.subr.mxu0 0.0
      %2525 = vmatpush2.msra.mxu0 0.0
      %2526 = vmatprep.subr.mxu0 0.0
      %2527 = vmatpush2.msra.mxu0 0.0
      %2528 = vmatprep.subr.mxu0 0.0
      %2529 = vmatpush2.msra.mxu0 0.0
      %2530 = vmatprep.subr.mxu0 0.0
      %2531 = vmatpush2.msra.mxu0 0.0
      %2532 = vmatprep.subr.mxu0 0.0
      %2533 = vmatpush2.msra.mxu0 0.0
      %2534 = vmatprep.subr.mxu0 0.0
      %2535 = vmatpush2.msra.mxu0 0.0
      %2536 = vmatprep.subr.mxu0 0.0
      %2537 = vmatpush2.msra.mxu0 0.0
      %2538 = vmatprep.subr.mxu0 0.0
      %2539 = vmatpush2.msra.mxu0 0.0
      %2540 = vmatprep.subr.mxu0 0.0
      %2541 = vmatpush2.msra.mxu0 0.0
      %2542 = vmatprep.subr.mxu0 0.0
      %2543 = vmatpush2.msra.mxu0 0.0
      %2544 = vmatprep.subr.mxu0 0.0
      %2545 = vmatpush2.msra.mxu0 0.0
      %2546 = vmatprep.subr.mxu0 0.0
      %2547 = vmatpush2.msra.mxu0 0.0
      %2548 = vmatprep.subr.mxu0 0.0
      %2549 = vmatpush2.msra.mxu0 0.0
      %2550 = vmatprep.subr.mxu0 0.0
      %2551 = vmatpush2.msra.mxu0 0.0
      %2552 = vmatprep.subr.mxu0 0.0
      %2553 = vmatpush2.msra.mxu0 0.0
      %2554 = vmatprep.mubr.f32.mxu0 0.0
      %2555 = vmatmul.mubr.f32.gmra.mxu0 %v2402
      %v2556 = vpop.f32.mrf.mxu0
      %v2557 = vadd.f32 %v2477, %v2556
      %v2558 = vpop.f32.mrf.mxu0
      %2559 = vmatprep.mubr.f32.mxu0 0.0
      %2560 = vmatmul.mubr.f32.gmra.mxu0 %v2405
      %v2561 = vpop.f32.mrf.mxu0
      %v2562 = vadd.f32 %v2482, %v2561
      %v2563 = vpop.f32.mrf.mxu0
      %2564 = vmatprep.mubr.f32.mxu0 0.0
      %2565 = vmatmul.mubr.f32.gmra.mxu0 %v2408
      %v2566 = vpop.f32.mrf.mxu0
      %v2567 = vadd.f32 %v2487, %v2566
      %v2568 = vpop.f32.mrf.mxu0
      %2569 = vdwg.mxu0
      %v2570 = vadd.f32 %v2557, %v441
      %v2571 = vadd.f32 %v2562, %v442
      %v2572 = vadd.f32 %v2567, %v443
      %2573 = vst.msk [vmem:[%s440] sm:$0xff] %vm571, %v2570
      %2574 = vst.msk [vmem:[%s440 + $0x8] sm:$0xff] %vm571, %v2571
      %vm2575 = vcmask 652288
      %2576 = vst.msk [vmem:[%s440 + $0x10] sm:$0x3f] %vm2575, %v2572
      %p2577 = scmp.lt.s32.totalorder %s24, 1
      %s2578 = scalar_select %p2577, %s24, 1
      %s2579 = smul.addr %s2578, 3
      %s2580 = smul.addr %s2579, 8
      %s2581 = scalar_lea.vmem %s13, %s2580
      // Predicated region
      $region73: #{gcn_forward_pallas.1} parent=71 // pred_check
        %p2582 = pneg %p320
      $region74: #{gcn_forward_pallas.1} parent=71 // pred_check_branch
        %2584 = sbr.rel (%p2582) target = $region76
      $region75: #{gcn_forward_pallas.1} parent=71 // pred_region
        _
      $region76: #{gcn_forward_pallas.1} parent=71 // pred_fallthru
        _
    $region72: #{gcn_forward_pallas.1} parent=5 // pred_fallthru
      _
    %p2585 = scmp.le.s32.totalorder 2, %s19
    // Predicated region
    $region77: #{gcn_forward_pallas.1} parent=5 // pred_check
      %p2586 = pneg %p2585
    $region78: #{gcn_forward_pallas.1} parent=5 // pred_check_branch
      %2588 = sbr.rel (%p2586) target = $region80
    $region79: #{gcn_forward_pallas.1} parent=5 // pred_region
      %s2589 = ssub.s32 %s19, 2
      // Predicated region
      $region81: #{gcn_forward_pallas.1} parent=79 // pred_check
        %p2590 = pneg %p326
      $region82: #{gcn_forward_pallas.1} parent=79 // pred_check_branch
        %2592 = sbr.rel (%p2590) target = $region84
      $region83: #{gcn_forward_pallas.1} parent=79 // pred_region
        %p2593 = scmp.lt.s32.totalorder %s25, 1
        %s2594 = scalar_select %p2593, %s25, 1
        %s2595 = smul.addr %s2594, 3
        %s2596 = smul.addr %s2595, 8
        %s2597 = scalar_lea.vmem %s13, %s2596
      $region84: #{gcn_forward_pallas.1} parent=79 // pred_fallthru
        _
    $region80: #{gcn_forward_pallas.1} parent=5 // pred_fallthru
      _
  $region6: #{gcn_forward_pallas.1} parent=0 // loop_footer
    %s23 = sadd.s32 1, %s19
  $region7: #{gcn_forward_pallas.1} parent=0 // loop_footer_branch
    %18 = sbr.rel target = $region3
  $region8: #{gcn_forward_pallas.1} parent=0 // loop_exit
    _

</llo_original>
